<compile_context>
chip_gen: v7x
topology: tpu7x:2x2x1
jax: 0.10.0
libtpu: 0.0.40
codegen_flags: <defaults>
</compile_context>

<pallas_src>
from functools import partial

import numpy as np
import jax
import jax.numpy as jnp
from jax.experimental import pallas as pl
from jax.experimental.pallas import tpu as pltpu

LANES = 128          # lane axis width of the streamed slab
SUB_R = 512          # rows folded per in-kernel chunk (64 f32 vregs, 256 KiB)
MAX_TILE_R = 8192    # rows per HBM tile: 4 MiB f32 / 2 MiB bf16, double-buffered


def _round_up(a, b):
    return -(-a // b) * b


# ----------------------------------------------------------------------------
# Pallas kernel: fused min / max / sum / sum-of-squares reduction
# ----------------------------------------------------------------------------
def _pallas_stats(x):
    """Per-core partial accumulators, shape (2, 4, 8, 128) f32.

    out[c, 0] = elementwise-min partial, out[c, 1] = max partial,
    out[c, 2] = sum partial,             out[c, 3] = sum-of-squares partial.
    Positions that saw no data hold the neutral element (+inf / -inf / 0), so
    the tiny final collapse is done with plain jnp reductions.
    """
    n = int(np.prod(x.shape))
    if x.dtype not in (jnp.float32, jnp.bfloat16, jnp.float16):
        x = x.astype(jnp.float32)            # ints etc.; floats stream natively

    rows = -(-n // LANES)
    flat = jnp.ravel(x)
    if rows * LANES != n:
        # Unavoidable copy, but only when n % 128 != 0 and only <=127 elements.
        flat = jnp.pad(flat, (0, rows * LANES - n))
    x2d = flat.reshape(rows, LANES)          # free view when n % 128 == 0

    full_rows, rem = divmod(n, LANES)        # static python ints
    limit = full_rows + (1 if rem else 0)    # chunks starting below this hold data

    tile_r = min(MAX_TILE_R, _round_up(rows, SUB_R))   # always a multiple of SUB_R
    nsub = tile_r // SUB_R
    nblk = -(-rows // tile_r)                # valid input blocks (last may be ragged)
    spc = -(-nblk // 2)                      # blocks per core (grid axis 1)

    def kernel(x_ref, out_ref, acc_min, acc_max, acc_sum, acc_sq):
        c = pl.program_id(0)
        i = pl.program_id(1)

        @pl.when(i == 0)
        def _():
            acc_min[...] = jnp.full_like(acc_min, jnp.inf)
            acc_max[...] = jnp.full_like(acc_max, -jnp.inf)
            acc_sum[...] = jnp.zeros_like(acc_sum)
            acc_sq[...] = jnp.zeros_like(acc_sq)

        blk = c * spc + i
        row0 = blk * tile_r

        def accumulate(xmn, xmx, xz):
            mn3 = xmn.reshape(SUB_R // 8, 8, LANES)
            mx3 = xmx.reshape(SUB_R // 8, 8, LANES)
            z3 = xz.reshape(SUB_R // 8, 8, LANES)
            acc_min[...] = jnp.minimum(acc_min[...], jnp.min(mn3, axis=0))
            acc_max[...] = jnp.maximum(acc_max[...], jnp.max(mx3, axis=0))
            acc_sum[...] = acc_sum[...] + jnp.sum(z3, axis=0)
            acc_sq[...] = acc_sq[...] + jnp.sum(z3 * z3, axis=0)

        # Skip duplicated (index-clamped) blocks introduced by the 2-core split.
        @pl.when(blk < nblk)
        def _():
            @pl.loop(0, nsub)
            def _(k):
                r0 = pl.multiple_of(k * SUB_R, SUB_R)
                crow0 = row0 + r0
                xc = x_ref[pl.ds(r0, SUB_R), :].astype(jnp.float32)

                # Fast path: every element of this chunk is valid -> no mask cost.
                @pl.when(crow0 + SUB_R <= full_rows)
                def _():
                    accumulate(xc, xc, xc)

                # Tail path: chunk overlaps the ragged / padded tail -> mask it.
                @pl.when((crow0 + SUB_R > full_rows) & (crow0 < limit))
                def _():
                    grow = crow0 + jax.lax.broadcasted_iota(
                        jnp.int32, (SUB_R, LANES), 0)
                    valid = grow < full_rows
                    if rem:
                        lidx = jax.lax.broadcasted_iota(
                            jnp.int32, (SUB_R, LANES), 1)
                        valid = valid | ((grow == full_rows) & (lidx < rem))
                    accumulate(jnp.where(valid, xc, jnp.inf),
                               jnp.where(valid, xc, -jnp.inf),
                               jnp.where(valid, xc, 0.0))

        @pl.when(i == spc - 1)
        def _():
            out_ref[0, 0] = acc_min[...]
            out_ref[0, 1] = acc_max[...]
            out_ref[0, 2] = acc_sum[...]
            out_ref[0, 3] = acc_sq[...]

    def x_map(c, i):
        # Clamp so a possibly-empty trailing step of core 1 stays in bounds;
        # the duplicated block is skipped inside the kernel body.
        return (jnp.minimum(c * spc + i, nblk - 1), 0)

    return pl.pallas_call(
        kernel,
        out_shape=jax.ShapeDtypeStruct((2, 4, 8, LANES), jnp.float32),
        grid_spec=pltpu.PrefetchScalarGridSpec(
            num_scalar_prefetch=0,
            grid=(2, spc),
            in_specs=[pl.BlockSpec((tile_r, LANES), x_map)],
            out_specs=pl.BlockSpec((1, 4, 8, LANES), lambda c, i: (c, 0, 0, 0)),
            scratch_shapes=[pltpu.VMEM((8, LANES), jnp.float32)] * 4,
        ),
        compiler_params=pltpu.CompilerParams(
            dimension_semantics=("parallel", "arbitrary"),
            vmem_limit_bytes=32 * 1024 * 1024,
        ),
    )(x2d)


# ----------------------------------------------------------------------------
# Device-side post-processing (std clipping), fused with the kernel in one jit
# ----------------------------------------------------------------------------
@partial(jax.jit, static_argnames=("std_scale",))
def _observe(x, std_scale):
    n = int(np.prod(x.shape))
    parts = _pallas_stats(x)
    mn = jnp.min(parts[:, 0])
    mx = jnp.max(parts[:, 1])
    s = jnp.sum(parts[:, 2])
    ss = jnp.sum(parts[:, 3])
    nf = jnp.float32(n)
    mean = s / nf
    # Unbiased variance (torch.std default, correction=1); n == 1 yields NaN,
    # matching torch.  TODO(synk): E[x^2]-E[x]^2 in f32 can cancel for data
    # with |mean| >> std; a Welford-style merge would need a second pass.
    var = (ss - s * mean) / jnp.float32(n - 1)
    std = jnp.sqrt(jnp.maximum(var, 0.0))
    min_cur = jnp.maximum(mn, mean - std_scale * std)
    max_cur = jnp.minimum(mx, mean + std_scale * std)
    return min_cur.reshape(1), max_cur.reshape(1)


# ----------------------------------------------------------------------------
# ClipStdObserver (per_tensor_symmetric, qint8 default: quant_min=-128, quant_max=127)
# ----------------------------------------------------------------------------
class ClipStdObserver:
    def __init__(self, std_scale=3.0, averaging_constant=0.01,
                 quant_min=-128, quant_max=127):
        assert std_scale > 0, "std_scale should be greater than 0."
        self.std_scale = float(std_scale)
        self.averaging_constant = float(averaging_constant)
        self.quant_min = int(quant_min)
        self.quant_max = int(quant_max)
        self.eps = jnp.asarray([np.finfo(np.float32).eps], dtype=jnp.float32)
        self.pow_quantization = False   # pow_quantization() global default
        self.min_val = jnp.zeros((0,), jnp.float32)
        self.max_val = jnp.zeros((0,), jnp.float32)

    def __call__(self, x):
        return self.forward(x)

    def forward(self, x_orig):
        if x_orig.size == 0:
            return x_orig
        min_cur, max_cur = _observe(x_orig, self.std_scale)
        if self.min_val.size == 0 or self.max_val.size == 0:
            self.min_val = min_cur
            self.max_val = max_cur
        else:
            c = self.averaging_constant
            self.min_val = self.min_val + c * (min_cur - self.min_val)
            self.max_val = self.max_val + c * (max_cur - self.max_val)
        return x_orig

    def calculate_qparams(self):
        if self.min_val.size == 0 or self.max_val.size == 0:
            return jnp.asarray([1.0], jnp.float32), jnp.asarray([0], jnp.int32)
        # TODO(synk): torch.distributed all_reduce for is_sync_quantize has no
        # single-device equivalent here.
        scale = jnp.maximum(-self.min_val, self.max_val)
        scale = jnp.maximum(scale, 0.0) / (float(self.quant_max - self.quant_min) / 2)
        scale = jnp.maximum(scale, self.eps)
        if self.pow_quantization:
            scale = 1.0 / 2.0 ** jnp.clip(jnp.floor(-jnp.log2(scale)), 1, 14)
        return scale.astype(jnp.float32), None


# ----------------------------------------------------------------------------
# Demo / self-test
# ----------------------------------------------------------------------------
if __name__ == "__main__":
    key = jax.random.PRNGKey(0)

    def ref_cur(x, std_scale=3.0):
        xf = x.astype(jnp.float32)
        mn, mx = jnp.min(xf), jnp.max(xf)
        mean = jnp.mean(xf)
        std = jnp.std(xf, ddof=1)
        return (jnp.maximum(mn, mean - std_scale * std),
                jnp.minimum(mx, mean + std_scale * std))

    # --- 1) moving-average behaviour on small f32 activations ---------------
    obs = ClipStdObserver(std_scale=3.0, averaging_constant=0.01)
    xs = [jax.random.normal(jax.random.fold_in(key, i), (2, 4, 16, 16),
                            dtype=jnp.float32) for i in range(3)]
    y = None
    for x in xs:
        y = obs(x)                      # forward returns its input unchanged
    jax.block_until_ready(y)
    jax.block_until_ready(obs.min_val)

    ref_min = ref_max = None
    for x in xs:
        mn, mx = ref_cur(x)
        if ref_min is None:
            ref_min, ref_max = mn.reshape(1), mx.reshape(1)
        else:
            ref_min = ref_min + 0.01 * (mn.reshape(1) - ref_min)
            ref_max = ref_max + 0.01 * (mx.reshape(1) - ref_max)
    np.testing.assert_allclose(np.asarray(obs.min_val), np.asarray(ref_min),
                               rtol=1e-5, atol=1e-6)
    np.testing.assert_allclose(np.asarray(obs.max_val), np.asarray(ref_max),
                               rtol=1e-5, atol=1e-6)

    scale, zero_point = obs.calculate_qparams()
    jax.block_until_ready(scale)
    assert scale.shape == (1,)
    assert bool(jnp.all(jnp.isfinite(scale))) and bool(jnp.all(scale > 0))

    # --- 2) ragged size (numel % 128 != 0) exercises the masked tail --------
    x_ragged = 5.0 + 2.0 * jax.random.normal(jax.random.fold_in(key, 10),
                                             (7, 33), dtype=jnp.float32)
    o2 = ClipStdObserver()
    o2(x_ragged)
    rmn, rmx = ref_cur(x_ragged)
    np.testing.assert_allclose(np.asarray(o2.min_val)[0], float(rmn),
                               rtol=1e-4, atol=1e-4)
    np.testing.assert_allclose(np.asarray(o2.max_val)[0], float(rmx),
                               rtol=1e-4, atol=1e-4)

    # --- 3) bf16 input streams natively through the DMA ---------------------
    x_bf16 = jax.random.normal(jax.random.fold_in(key, 20), (2, 4, 16, 16),
                               dtype=jnp.bfloat16)
    o3 = ClipStdObserver()
    o3(x_bf16)
    bmn, bmx = ref_cur(x_bf16)
    np.testing.assert_allclose(np.asarray(o3.min_val)[0], float(bmn),
                               rtol=1e-3, atol=1e-3)
    np.testing.assert_allclose(np.asarray(o3.max_val)[0], float(bmx),
                               rtol=1e-3, atol=1e-3)

    # --- 4) multi-block input exercises both grid cores + ragged last block -
    x_big = jax.random.normal(jax.random.fold_in(key, 30), (520, 2048),
                              dtype=jnp.float32)
    o4 = ClipStdObserver()
    o4(x_big)
    gmn, gmx = ref_cur(x_big)
    np.testing.assert_allclose(np.asarray(o4.min_val)[0], float(gmn),
                               rtol=1e-4, atol=1e-5)
    np.testing.assert_allclose(np.asarray(o4.max_val)[0], float(gmx),
                               rtol=1e-4, atol=1e-5)

    print("KERNEL_OK")
</pallas_src>

<mosaic_0001>
module attributes {stable_mosaic.version = 11 : i64} {
  func.func @kernel(%arg0: i32, %arg1: i32, %arg2: memref<512x128xf32, #tpu.memory_space<vmem>>, %arg3: memref<1x4x8x128xf32, #tpu.memory_space<vmem>>, %arg4: memref<8x128xf32, #tpu.memory_space<vmem>>, %arg5: memref<8x128xf32, #tpu.memory_space<vmem>>, %arg6: memref<8x128xf32, #tpu.memory_space<vmem>>, %arg7: memref<8x128xf32, #tpu.memory_space<vmem>>) attributes {dimension_semantics = [#tpu.dimension_semantics<parallel>, #tpu.dimension_semantics<arbitrary>], iteration_bounds = array<i64: 2, 1>, scalar_prefetch = 0 : i64, scratch_operands = 4 : i64, tpu.core_type = #tpu.core_type<tc>, window_params = [{transform_indices = @transform_0, window_bounds = array<i64: 512, 128>}, {transform_indices = @transform_1, window_bounds = array<i64: 1, 4, 8, 128>}]} {
    %c0_i32 = arith.constant 0 : i32
    %0 = arith.cmpi eq, %arg1, %c0_i32 : i32
    %1 = arith.extui %0 : i1 to i32
    %c0_i32_0 = arith.constant 0 : i32
    %2 = arith.cmpi ne, %1, %c0_i32_0 : i32
    scf.if %2 {
      %cst = arith.constant 0x7F800000 : f32
      %12 = vector.broadcast %cst : f32 to vector<8x128xf32>
      %c0 = arith.constant 0 : index
      %c0_5 = arith.constant 0 : index
      %13 = vector.load %arg4[%c0, %c0_5] : memref<8x128xf32, #tpu.memory_space<vmem>>, vector<8x128xf32>
      tpu.vector_store %arg4[%c0, %c0_5], %12 {strides = array<i32>} : memref<8x128xf32, #tpu.memory_space<vmem>>, vector<8x128xf32>,
      %cst_6 = arith.constant 0xFF800000 : f32
      %14 = vector.broadcast %cst_6 : f32 to vector<8x128xf32>
      %c0_7 = arith.constant 0 : index
      %c0_8 = arith.constant 0 : index
      %15 = vector.load %arg5[%c0_7, %c0_8] : memref<8x128xf32, #tpu.memory_space<vmem>>, vector<8x128xf32>
      tpu.vector_store %arg5[%c0_7, %c0_8], %14 {strides = array<i32>} : memref<8x128xf32, #tpu.memory_space<vmem>>, vector<8x128xf32>,
      %cst_9 = arith.constant 0.000000e+00 : f32
      %16 = vector.broadcast %cst_9 : f32 to vector<8x128xf32>
      %c0_10 = arith.constant 0 : index
      %c0_11 = arith.constant 0 : index
      %17 = vector.load %arg6[%c0_10, %c0_11] : memref<8x128xf32, #tpu.memory_space<vmem>>, vector<8x128xf32>
      tpu.vector_store %arg6[%c0_10, %c0_11], %16 {strides = array<i32>} : memref<8x128xf32, #tpu.memory_space<vmem>>, vector<8x128xf32>,
      %cst_12 = arith.constant 0.000000e+00 : f32
      %18 = vector.broadcast %cst_12 : f32 to vector<8x128xf32>
      %c0_13 = arith.constant 0 : index
      %c0_14 = arith.constant 0 : index
      %19 = vector.load %arg7[%c0_13, %c0_14] : memref<8x128xf32, #tpu.memory_space<vmem>>, vector<8x128xf32>
      tpu.vector_store %arg7[%c0_13, %c0_14], %18 {strides = array<i32>} : memref<8x128xf32, #tpu.memory_space<vmem>>, vector<8x128xf32>,
    } else {
    }
    %c1_i32 = arith.constant 1 : i32
    %3 = arith.muli %arg0, %c1_i32 : i32
    %4 = arith.addi %3, %arg1 : i32
    %c512_i32 = arith.constant 512 : i32
    %5 = arith.muli %4, %c512_i32 : i32
    %c1_i32_1 = arith.constant 1 : i32
    %6 = arith.cmpi slt, %4, %c1_i32_1 : i32
    %7 = arith.extui %6 : i1 to i32
    %c0_i32_2 = arith.constant 0 : i32
    %8 = arith.cmpi ne, %7, %c0_i32_2 : i32
    scf.if %8 {
      %c0_i32_5 = arith.constant 0 : i32
      %c1_i32_6 = arith.constant 1 : i32
      %12 = arith.muli %c0_i32_5, %c1_i32_6 : i32
      %c0_i32_7 = arith.constant 0 : i32
      %13 = arith.addi %c0_i32_7, %12 : i32
      %c512_i32_8 = arith.constant 512 : i32
      %14 = arith.muli %13, %c512_i32_8 : i32
      %15 = tpu.assume_multiple %14, 512 : i32
      %16 = arith.addi %5, %15 : i32
      %17 = arith.index_cast %15 : i32 to index
      %c0 = arith.constant 0 : index
      %18 = vector.load %arg2[%17, %c0] : memref<512x128xf32, #tpu.memory_space<vmem>>, vector<512x128xf32>
      %c512_i32_9 = arith.constant 512 : i32
      %19 = arith.addi %16, %c512_i32_9 : i32
      %c16_i32 = arith.constant 16 : i32
      %20 = arith.cmpi sle, %19, %c16_i32 : i32
      %21 = arith.extui %20 : i1 to i32
      %c0_i32_10 = arith.constant 0 : i32
      %22 = arith.cmpi ne, %21, %c0_i32_10 : i32
      scf.if %22 {
        %29 = vector.shape_cast %18 : vector<512x128xf32> to vector<64x8x128xf32>
        %30 = vector.shape_cast %18 : vector<512x128xf32> to vector<64x8x128xf32>
        %31 = vector.shape_cast %18 : vector<512x128xf32> to vector<64x8x128xf32>
        %c0_16 = arith.constant 0 : index
        %c0_17 = arith.constant 0 : index
        %32 = vector.load %arg4[%c0_16, %c0_17] : memref<8x128xf32, #tpu.memory_space<vmem>>, vector<8x128xf32>
        %cst = arith.constant dense<0x7F800000> : vector<8x128xf32>
        %33 = vector.multi_reduction <minimumf>, %29, %cst [0] : vector<64x8x128xf32> to vector<8x128xf32>
        %34 = arith.minimumf %32, %33 : vector<8x128xf32>
        %c0_18 = arith.constant 0 : index
        %c0_19 = arith.constant 0 : index
        %35 = vector.load %arg4[%c0_18, %c0_19] : memref<8x128xf32, #tpu.memory_space<vmem>>, vector<8x128xf32>
        tpu.vector_store %arg4[%c0_18, %c0_19], %34 {strides = array<i32>} : memref<8x128xf32, #tpu.memory_space<vmem>>, vector<8x128xf32>,
        %c0_20 = arith.constant 0 : index
        %c0_21 = arith.constant 0 : index
        %36 = vector.load %arg5[%c0_20, %c0_21] : memref<8x128xf32, #tpu.memory_space<vmem>>, vector<8x128xf32>
        %cst_22 = arith.constant dense<0xFF800000> : vector<8x128xf32>
        %37 = vector.multi_reduction <maximumf>, %30, %cst_22 [0] : vector<64x8x128xf32> to vector<8x128xf32>
        %38 = arith.maximumf %36, %37 : vector<8x128xf32>
        %c0_23 = arith.constant 0 : index
        %c0_24 = arith.constant 0 : index
        %39 = vector.load %arg5[%c0_23, %c0_24] : memref<8x128xf32, #tpu.memory_space<vmem>>, vector<8x128xf32>
        tpu.vector_store %arg5[%c0_23, %c0_24], %38 {strides = array<i32>} : memref<8x128xf32, #tpu.memory_space<vmem>>, vector<8x128xf32>,
        %c0_25 = arith.constant 0 : index
        %c0_26 = arith.constant 0 : index
        %40 = vector.load %arg6[%c0_25, %c0_26] : memref<8x128xf32, #tpu.memory_space<vmem>>, vector<8x128xf32>
        %cst_27 = arith.constant dense<0.000000e+00> : vector<8x128xf32>
        %41 = vector.multi_reduction <add>, %31, %cst_27 [0] : vector<64x8x128xf32> to vector<8x128xf32>
        %42 = arith.addf %40, %41 : vector<8x128xf32>
        %c0_28 = arith.constant 0 : index
        %c0_29 = arith.constant 0 : index
        %43 = vector.load %arg6[%c0_28, %c0_29] : memref<8x128xf32, #tpu.memory_space<vmem>>, vector<8x128xf32>
        tpu.vector_store %arg6[%c0_28, %c0_29], %42 {strides = array<i32>} : memref<8x128xf32, #tpu.memory_space<vmem>>, vector<8x128xf32>,
        %c0_30 = arith.constant 0 : index
        %c0_31 = arith.constant 0 : index
        %44 = vector.load %arg7[%c0_30, %c0_31] : memref<8x128xf32, #tpu.memory_space<vmem>>, vector<8x128xf32>
        %45 = arith.mulf %31, %31 : vector<64x8x128xf32>
        %cst_32 = arith.constant dense<0.000000e+00> : vector<8x128xf32>
        %46 = vector.multi_reduction <add>, %45, %cst_32 [0] : vector<64x8x128xf32> to vector<8x128xf32>
        %47 = arith.addf %44, %46 : vector<8x128xf32>
        %c0_33 = arith.constant 0 : index
        %c0_34 = arith.constant 0 : index
        %48 = vector.load %arg7[%c0_33, %c0_34] : memref<8x128xf32, #tpu.memory_space<vmem>>, vector<8x128xf32>
        tpu.vector_store %arg7[%c0_33, %c0_34], %47 {strides = array<i32>} : memref<8x128xf32, #tpu.memory_space<vmem>>, vector<8x128xf32>,
      } else {
      }
      %c512_i32_11 = arith.constant 512 : i32
      %23 = arith.addi %16, %c512_i32_11 : i32
      %c16_i32_12 = arith.constant 16 : i32
      %24 = arith.cmpi sgt, %23, %c16_i32_12 : i32
      %c16_i32_13 = arith.constant 16 : i32
      %25 = arith.cmpi slt, %16, %c16_i32_13 : i32
      %26 = arith.andi %24, %25 : i1
      %27 = arith.extui %26 : i1 to i32
      %c0_i32_14 = arith.constant 0 : i32
      %28 = arith.cmpi ne, %27, %c0_i32_14 : i32
      scf.if %28 {
        %29 = tpu.iota {dimensions = array<i32: 0>} : vector<512x128xi32>
        %30 = vector.broadcast %16 : i32 to vector<512x128xi32>
        %31 = arith.addi %30, %29 : vector<512x128xi32>
        %c16_i32_16 = arith.constant 16 : i32
        %32 = vector.broadcast %c16_i32_16 : i32 to vector<512x128xi32>
        %33 = arith.cmpi slt, %31, %32 : vector<512x128xi32>
        %cst = arith.constant 0x7F800000 : f32
        %34 = vector.broadcast %cst : f32 to vector<512x128xf32>
        %35 = arith.select %33, %18, %34 : vector<512x128xi1>, vector<512x128xf32>
        %cst_17 = arith.constant 0xFF800000 : f32
        %36 = vector.broadcast %cst_17 : f32 to vector<512x128xf32>
        %37 = arith.select %33, %18, %36 : vector<512x128xi1>, vector<512x128xf32>
        %cst_18 = arith.constant 0.000000e+00 : f32
        %38 = vector.broadcast %cst_18 : f32 to vector<512x128xf32>
        %39 = arith.select %33, %18, %38 : vector<512x128xi1>, vector<512x128xf32>
        %40 = vector.shape_cast %35 : vector<512x128xf32> to vector<64x8x128xf32>
        %41 = vector.shape_cast %37 : vector<512x128xf32> to vector<64x8x128xf32>
        %42 = vector.shape_cast %39 : vector<512x128xf32> to vector<64x8x128xf32>
        %c0_19 = arith.constant 0 : index
        %c0_20 = arith.constant 0 : index
        %43 = vector.load %arg4[%c0_19, %c0_20] : memref<8x128xf32, #tpu.memory_space<vmem>>, vector<8x128xf32>
        %cst_21 = arith.constant dense<0x7F800000> : vector<8x128xf32>
        %44 = vector.multi_reduction <minimumf>, %40, %cst_21 [0] : vector<64x8x128xf32> to vector<8x128xf32>
        %45 = arith.minimumf %43, %44 : vector<8x128xf32>
        %c0_22 = arith.constant 0 : index
        %c0_23 = arith.constant 0 : index
        %46 = vector.load %arg4[%c0_22, %c0_23] : memref<8x128xf32, #tpu.memory_space<vmem>>, vector<8x128xf32>
        tpu.vector_store %arg4[%c0_22, %c0_23], %45 {strides = array<i32>} : memref<8x128xf32, #tpu.memory_space<vmem>>, vector<8x128xf32>,
        %c0_24 = arith.constant 0 : index
        %c0_25 = arith.constant 0 : index
        %47 = vector.load %arg5[%c0_24, %c0_25] : memref<8x128xf32, #tpu.memory_space<vmem>>, vector<8x128xf32>
        %cst_26 = arith.constant dense<0xFF800000> : vector<8x128xf32>
        %48 = vector.multi_reduction <maximumf>, %41, %cst_26 [0] : vector<64x8x128xf32> to vector<8x128xf32>
        %49 = arith.maximumf %47, %48 : vector<8x128xf32>
        %c0_27 = arith.constant 0 : index
        %c0_28 = arith.constant 0 : index
        %50 = vector.load %arg5[%c0_27, %c0_28] : memref<8x128xf32, #tpu.memory_space<vmem>>, vector<8x128xf32>
        tpu.vector_store %arg5[%c0_27, %c0_28], %49 {strides = array<i32>} : memref<8x128xf32, #tpu.memory_space<vmem>>, vector<8x128xf32>,
        %c0_29 = arith.constant 0 : index
        %c0_30 = arith.constant 0 : index
        %51 = vector.load %arg6[%c0_29, %c0_30] : memref<8x128xf32, #tpu.memory_space<vmem>>, vector<8x128xf32>
        %cst_31 = arith.constant dense<0.000000e+00> : vector<8x128xf32>
        %52 = vector.multi_reduction <add>, %42, %cst_31 [0] : vector<64x8x128xf32> to vector<8x128xf32>
        %53 = arith.addf %51, %52 : vector<8x128xf32>
        %c0_32 = arith.constant 0 : index
        %c0_33 = arith.constant 0 : index
        %54 = vector.load %arg6[%c0_32, %c0_33] : memref<8x128xf32, #tpu.memory_space<vmem>>, vector<8x128xf32>
        tpu.vector_store %arg6[%c0_32, %c0_33], %53 {strides = array<i32>} : memref<8x128xf32, #tpu.memory_space<vmem>>, vector<8x128xf32>,
        %c0_34 = arith.constant 0 : index
        %c0_35 = arith.constant 0 : index
        %55 = vector.load %arg7[%c0_34, %c0_35] : memref<8x128xf32, #tpu.memory_space<vmem>>, vector<8x128xf32>
        %56 = arith.mulf %42, %42 : vector<64x8x128xf32>
        %cst_36 = arith.constant dense<0.000000e+00> : vector<8x128xf32>
        %57 = vector.multi_reduction <add>, %56, %cst_36 [0] : vector<64x8x128xf32> to vector<8x128xf32>
        %58 = arith.addf %55, %57 : vector<8x128xf32>
        %c0_37 = arith.constant 0 : index
        %c0_38 = arith.constant 0 : index
        %59 = vector.load %arg7[%c0_37, %c0_38] : memref<8x128xf32, #tpu.memory_space<vmem>>, vector<8x128xf32>
        tpu.vector_store %arg7[%c0_37, %c0_38], %58 {strides = array<i32>} : memref<8x128xf32, #tpu.memory_space<vmem>>, vector<8x128xf32>,
      } else {
      }
      %c1_i32_15 = arith.constant 1 : i32
    } else {
    }
    %c0_i32_3 = arith.constant 0 : i32
    %9 = arith.cmpi eq, %arg1, %c0_i32_3 : i32
    %10 = arith.extui %9 : i1 to i32
    %c0_i32_4 = arith.constant 0 : i32
    %11 = arith.cmpi ne, %10, %c0_i32_4 : i32
    scf.if %11 {
      %c0 = arith.constant 0 : index
      %c0_5 = arith.constant 0 : index
      %12 = vector.load %arg4[%c0, %c0_5] : memref<8x128xf32, #tpu.memory_space<vmem>>, vector<8x128xf32>
      %c0_6 = arith.constant 0 : index
      %c0_7 = arith.constant 0 : index
      %c0_8 = arith.constant 0 : index
      %c0_9 = arith.constant 0 : index
      %13 = vector.load %arg3[%c0_6, %c0_7, %c0_8, %c0_9] : memref<1x4x8x128xf32, #tpu.memory_space<vmem>>, vector<1x1x8x128xf32>
      %14 = vector.shape_cast %13 : vector<1x1x8x128xf32> to vector<8x128xf32>
      %15 = vector.shape_cast %12 : vector<8x128xf32> to vector<1x1x8x128xf32>
      tpu.vector_store %arg3[%c0_6, %c0_7, %c0_8, %c0_9], %15 {strides = array<i32>} : memref<1x4x8x128xf32, #tpu.memory_space<vmem>>, vector<1x1x8x128xf32>,
      %c0_10 = arith.constant 0 : index
      %c0_11 = arith.constant 0 : index
      %16 = vector.load %arg5[%c0_10, %c0_11] : memref<8x128xf32, #tpu.memory_space<vmem>>, vector<8x128xf32>
      %c0_12 = arith.constant 0 : index
      %c1 = arith.constant 1 : index
      %c0_13 = arith.constant 0 : index
      %c0_14 = arith.constant 0 : index
      %17 = vector.load %arg3[%c0_12, %c1, %c0_13, %c0_14] : memref<1x4x8x128xf32, #tpu.memory_space<vmem>>, vector<1x1x8x128xf32>
      %18 = vector.shape_cast %17 : vector<1x1x8x128xf32> to vector<8x128xf32>
      %19 = vector.shape_cast %16 : vector<8x128xf32> to vector<1x1x8x128xf32>
      tpu.vector_store %arg3[%c0_12, %c1, %c0_13, %c0_14], %19 {strides = array<i32>} : memref<1x4x8x128xf32, #tpu.memory_space<vmem>>, vector<1x1x8x128xf32>,
      %c0_15 = arith.constant 0 : index
      %c0_16 = arith.constant 0 : index
      %20 = vector.load %arg6[%c0_15, %c0_16] : memref<8x128xf32, #tpu.memory_space<vmem>>, vector<8x128xf32>
      %c0_17 = arith.constant 0 : index
      %c2 = arith.constant 2 : index
      %c0_18 = arith.constant 0 : index
      %c0_19 = arith.constant 0 : index
      %21 = vector.load %arg3[%c0_17, %c2, %c0_18, %c0_19] : memref<1x4x8x128xf32, #tpu.memory_space<vmem>>, vector<1x1x8x128xf32>
      %22 = vector.shape_cast %21 : vector<1x1x8x128xf32> to vector<8x128xf32>
      %23 = vector.shape_cast %20 : vector<8x128xf32> to vector<1x1x8x128xf32>
      tpu.vector_store %arg3[%c0_17, %c2, %c0_18, %c0_19], %23 {strides = array<i32>} : memref<1x4x8x128xf32, #tpu.memory_space<vmem>>, vector<1x1x8x128xf32>,
      %c0_20 = arith.constant 0 : index
      %c0_21 = arith.constant 0 : index
      %24 = vector.load %arg7[%c0_20, %c0_21] : memref<8x128xf32, #tpu.memory_space<vmem>>, vector<8x128xf32>
      %c0_22 = arith.constant 0 : index
      %c3 = arith.constant 3 : index
      %c0_23 = arith.constant 0 : index
      %c0_24 = arith.constant 0 : index
      %25 = vector.load %arg3[%c0_22, %c3, %c0_23, %c0_24] : memref<1x4x8x128xf32, #tpu.memory_space<vmem>>, vector<1x1x8x128xf32>
      %26 = vector.shape_cast %25 : vector<1x1x8x128xf32> to vector<8x128xf32>
      %27 = vector.shape_cast %24 : vector<8x128xf32> to vector<1x1x8x128xf32>
      tpu.vector_store %arg3[%c0_22, %c3, %c0_23, %c0_24], %27 {strides = array<i32>} : memref<1x4x8x128xf32, #tpu.memory_space<vmem>>, vector<1x1x8x128xf32>,
    } else {
    }
    return
  }
  func.func @transform_0(%arg0: i32, %arg1: i32) -> (i32, i32) {
    %c1_i32 = arith.constant 1 : i32
    %0 = arith.muli %arg0, %c1_i32 : i32
    %1 = arith.addi %0, %arg1 : i32
    %c0_i32 = arith.constant 0 : i32
    %2 = arith.minsi %1, %c0_i32 : i32
    %c0_i32_0 = arith.constant 0 : i32
    %c0_i32_1 = arith.constant 0 : i32
    return %2, %c0_i32_0 : i32, i32
  }
  func.func @transform_1(%arg0: i32, %arg1: i32) -> (i32, i32, i32, i32) {
    %c0_i32 = arith.constant 0 : i32
    %c0_i32_0 = arith.constant 0 : i32
    %c0_i32_1 = arith.constant 0 : i32
    %c0_i32_2 = arith.constant 0 : i32
    return %arg0, %c0_i32, %c0_i32_0, %c0_i32_1 : i32, i32, i32, i32
  }
}

</mosaic_0001>

<llo_original>
// kernel: _observe.1
$region0: #{_observe.1}
  #allocation0 [shape = 'u32[]', space=smem, size = 0x4, offset = 0x4, fixed_abs, tag = 'smem constant byte address 0x4 - core index']
  #allocation1 [shape = 'u32[144,128]{1,0:T(1,128)}', space=vmem, size = 0x12000, scoped, tag = 'internal scratch']
  #allocation2 [shape = 'f32[8,128]{1,0:T(8,128)}', space=vmem, size = 0x1000, scoped, tag = 'scratch operand']
  #allocation3 [shape = 'f32[8,128]{1,0:T(8,128)}', space=vmem, size = 0x1000, scoped, tag = 'scratch operand']
  #allocation4 [shape = 'f32[8,128]{1,0:T(8,128)}', space=vmem, size = 0x1000, scoped, tag = 'scratch operand']
  #allocation5 [shape = 'f32[8,128]{1,0:T(8,128)}', space=vmem, size = 0x1000, scoped, tag = 'scratch operand']
  %s0 = inlined_call_operand.vmem [shape: f32[16,128], index: 0, kind: input, shape index: {}]
  %s1 = inlined_call_operand.vmem [shape: f32[2,4,8,128], index: 1, kind: output, shape index: {}]
  %s2 = sld [smem:[#allocation0]]
  $region57: #{_observe.1} parent=0
    _
  %s4 = ssub.s32 1, %s2
  %s5 = scalar_select 0, %s4, %s2
  loop: start=0, step=1, limit=4
  $region2: #{_observe.1} parent=0 // loop_pre_header
    _
  $region3: #{_observe.1} parent=0 // loop_header
    %s7 = sphi 0, %s11
    %p8 = scmp.ge.s32.totalorder %s7, 4
    %s14 = sphi 0, %s26
    %s15 = sphi 0, %s22
    %s16 = sphi 0, %s14
    %s17 = sphi 0, %s15
    %s18 = sphi 0, %s16
    %s19 = sphi 0, %s17
    %s35 = sphi 0, %s37
    %s38 = sphi 0, %s35
    %s39 = sphi 0, %s38
    %s55 = sphi 0, %s39
    %s61 = sphi 0, %s63
    %s64 = sphi 0, %s61
    %s65 = sphi 0, %s64
    %s81 = sphi 0, %s65
  $region4: #{_observe.1} parent=0 // loop_header_branch
    %10 = sbr.rel (%p8) target = $region8
  $region5: #{_observe.1} parent=0 // loop_body
    %s12 = ssub.s32 %s7, 1
    %s13 = ssub.s32 %s7, 2
    %s20 = sadd.s32 1, %s15
    %p21 = scmp.ge.s32.totalorder %s20, 1
    %s22 = scalar_select %p21, 0, %s20
    %s23 = sadd.s32 1, %s14
    %s24 = scalar_select %p21, %s23, %s14
    %p25 = scmp.ge.s32.totalorder %s24, 2
    %s26 = scalar_select %p25, 0, %s24
    %s27 = sadd.s32 %s14, %s15
    %p28 = scmp.lt.s32.totalorder %s27, 0
    %s29 = scalar_select %p28, %s27, 0
    %s30 = sadd.s32 %s26, %s22
    %p31 = scmp.lt.s32.totalorder %s30, 0
    %s32 = scalar_select %p31, %s30, 0
    %s33 = ssub.s32 %s29, %s32
    %p34 = scmp.eq.s32.totalorder %s33, 0
    %s36 = sadd.s32 %s35, 1
    %s37 = scalar_select %p34, %s35, %s36
    %p40 = pneg %p34
    %p41 = scmp.eq.s32.totalorder %s7, 1
    %p42 = por %p40, %p41
    %p43 = scmp.ne.s32.totalorder %s35, %s38
    %p44 = scmp.eq.s32.totalorder %s7, 0
    %p45 = por %p43, %p44
    %p46 = scmp.ne.s32.totalorder %s35, %s38
    %p47 = scmp.eq.s32.totalorder %s12, 1
    %p48 = por %p46, %p47
    %p49 = scmp.ne.s32.totalorder %s38, %s39
    %p50 = scmp.eq.s32.totalorder %s12, 0
    %p51 = por %p49, %p50
    %p52 = scmp.ne.s32.totalorder %s38, %s39
    %p53 = scmp.eq.s32.totalorder %s13, 1
    %p54 = por %p52, %p53
    %p56 = scmp.ne.s32.totalorder %s39, %s55
    %p57 = scmp.eq.s32.totalorder %s13, 0
    %p58 = por %p56, %p57
    %s59 = ssub.s32 %s14, %s26
    %p60 = scmp.eq.s32.totalorder %s59, 0
    %s62 = sadd.s32 %s61, 1
    %s63 = scalar_select %p60, %s61, %s62
    %p66 = pneg %p60
    %p67 = scmp.eq.s32.totalorder %s7, 1
    %p68 = por %p66, %p67
    %p69 = scmp.ne.s32.totalorder %s61, %s64
    %p70 = scmp.eq.s32.totalorder %s7, 0
    %p71 = por %p69, %p70
    %p72 = scmp.ne.s32.totalorder %s61, %s64
    %p73 = scmp.eq.s32.totalorder %s12, 1
    %p74 = por %p72, %p73
    %p75 = scmp.ne.s32.totalorder %s64, %s65
    %p76 = scmp.eq.s32.totalorder %s12, 0
    %p77 = por %p75, %p76
    %p78 = scmp.ne.s32.totalorder %s64, %s65
    %p79 = scmp.eq.s32.totalorder %s13, 1
    %p80 = por %p78, %p79
    %p82 = scmp.ne.s32.totalorder %s65, %s81
    %p83 = scmp.eq.s32.totalorder %s13, 0
    %p84 = por %p82, %p83
    %p85 = scmp.le.s32.totalorder 1, %s7
    %p86 = scmp.lt.s32.totalorder %s7, 3
    %p87 = pnand %p85, %p86
    %p88 = pneg %p87
    // Predicated region
    $region9: #{_observe.1} parent=5 // pred_check
      _
    $region10: #{_observe.1} parent=5 // pred_check_branch
      %90 = sbr.rel (%p87) target = $region12
    $region11: #{_observe.1} parent=5 // pred_region
      %s91 = ssub.s32 %s7, 1
    $region12: #{_observe.1} parent=5 // pred_fallthru
      _
    %p92 = scmp.lt.s32.totalorder %s7, 2
    // Predicated region
    $region13: #{_observe.1} parent=5 // pred_check
      %p93 = pneg %p92
    $region14: #{_observe.1} parent=5 // pred_check_branch
      %95 = sbr.rel (%p93) target = $region16
    $region15: #{_observe.1} parent=5 // pred_region
      // Predicated region
      $region17: #{_observe.1} parent=15 // pred_check
        %p96 = pneg %p45
      $region18: #{_observe.1} parent=15 // pred_check_branch
        %98 = sbr.rel (%p96) target = $region20
      $region19: #{_observe.1} parent=15 // pred_region
        %s99 = sadd.s32 %s14, %s15
        %p100 = scmp.lt.s32.totalorder %s99, 0
        %s101 = scalar_select %p100, %s99, 0
        %s102 = smul.u32 64, %s101
        %s103 = ssub.s32 2, %s102
        %s104 = smul.u32 128, %s103
        %p105 = scmp.lt.s32.totalorder %s102, 1
        %s106 = scalar_select %p105, %s102, 1
        %s107 = smul.addr %s106, 8
        %s108 = scalar_lea.vmem %s0, %s107
        %s109 = sadd.s32 %s14, %s15
        %p110 = scmp.lt.s32.totalorder %s109, 0
        %s111 = scalar_select %p110, %s109, 0
        %s112 = smul.u32 64, %s111
        %s113 = ssub.s32 2, %s112
        %s114 = smul.u32 128, %s113
      $region20: #{_observe.1} parent=15 // pred_fallthru
        _
    $region16: #{_observe.1} parent=5 // pred_fallthru
      _
    %p115 = scmp.le.s32.totalorder 1, %s7
    %p116 = scmp.lt.s32.totalorder %s7, 3
    %p117 = pnand %p115, %p116
    %p118 = pneg %p117
    // Predicated region
    $region21: #{_observe.1} parent=5 // pred_check
      _
    $region22: #{_observe.1} parent=5 // pred_check_branch
      %120 = sbr.rel (%p117) target = $region24
    $region23: #{_observe.1} parent=5 // pred_region
      %s121 = ssub.s32 %s7, 1
      %s122 = sadd.s32 %s16, %s17
      %p123 = scmp.lt.s32.totalorder %s122, 0
      %s124 = scalar_select %p123, %s122, 0
      %s125 = smul.u32 64, %s124
      %s126 = ssub.s32 2, %s125
      %s127 = smul.u32 128, %s126
      %p128 = scmp.lt.s32.totalorder %s125, 1
      %s129 = scalar_select %p128, %s125, 1
      %s130 = smul.addr %s129, 8
      %s131 = scalar_lea.vmem %s0, %s130
      %p132 = pneg %p51
      %p133 = pneg %p48
      %p134 = pneg %p77
      %p135 = pneg %p74
      %p136 = scmp.lt.s32.totalorder %s16, 1
      %s137 = scalar_select %p136, %s16, 1
      %s138 = smul.addr %s137, 4
      %s139 = smul.addr %s138, 8
      %s140 = scalar_lea.vmem %s1, %s139
      %s141 = sadd.s32 %s16, %s17
      %p142 = scmp.lt.s32.totalorder %s141, 0
      %s143 = scalar_select %p142, %s141, 0
      %s144 = smul.u32 64, %s143
      %s145 = ssub.s32 2, %s144
      %s146 = smul.u32 128, %s145
      %p147 = scmp.lt.s32.totalorder %s144, 1
      %s148 = scalar_select %p147, %s144, 1
      %s149 = smul.addr %s148, 8
      %s150 = scalar_lea.vmem %s0, %s149
      %s151 = sadd.s32 %s16, %s17
      %p152 = scmp.lt.s32.totalorder %s151, 0
      %s153 = scalar_select %p152, %s151, 0
      %s154 = smul.u32 64, %s153
      %s155 = ssub.s32 2, %s154
      %s156 = smul.u32 128, %s155
      %p157 = scmp.lt.s32.totalorder %s16, 1
      %s158 = scalar_select %p157, %s16, 1
      %s159 = smul.addr %s158, 4
      %s160 = smul.addr %s159, 8
      %s161 = scalar_lea.vmem %s1, %s160
      %p162 = scmp.eq.s32.totalorder %s17, 0
      // Predicated region
      $region25: #{_observe.1} parent=23 // pred_check
        %p163 = pneg %p162
      $region26: #{_observe.1} parent=23 // pred_check_branch
        %165 = sbr.rel (%p163) target = $region28
      $region27: #{_observe.1} parent=23 // pred_region
        %166 = vst [vmem:[#allocation2] sm:$0xff] inf
        %167 = vst [vmem:[#allocation3] sm:$0xff] -inf
        %168 = vst [vmem:[#allocation4] sm:$0xff] 0.0
        %169 = vst [vmem:[#allocation5] sm:$0xff] 0.0
      $region28: #{_observe.1} parent=23 // pred_fallthru
        _
      %s170 = sadd.s32 %s16, %s17
      %s171 = smul.u32 %s170, 512
      %p172 = scmp.lt.s32.totalorder %s170, 1
      // Predicated region
      $region29: #{_observe.1} parent=23 // pred_check
        %p173 = pneg %p172
      $region30: #{_observe.1} parent=23 // pred_check_branch
        %175 = sbr.rel (%p173) target = $region32
      $region31: #{_observe.1} parent=23 // pred_region
        %s176 = sadd.s32 %s171, 0
        %v177 = vld [vmem:[%s150] sm:$0xff]
        %v178 = vld [vmem:[%s150 + $0x8] sm:$0xff]
        %v179 = vld [vmem:[%s150 + $0x10] sm:$0xff]
        %v180 = vld [vmem:[%s150 + $0x18] sm:$0xff]
        %v181 = vld [vmem:[%s150 + $0x20] sm:$0xff]
        %v182 = vld [vmem:[%s150 + $0x28] sm:$0xff]
        %v183 = vld [vmem:[%s150 + $0x30] sm:$0xff]
        %v184 = vld [vmem:[%s150 + $0x38] sm:$0xff]
        %v185 = vld [vmem:[%s150 + $0x40] sm:$0xff]
        %v186 = vld [vmem:[%s150 + $0x48] sm:$0xff]
        %v187 = vld [vmem:[%s150 + $0x50] sm:$0xff]
        %v188 = vld [vmem:[%s150 + $0x58] sm:$0xff]
        %v189 = vld [vmem:[%s150 + $0x60] sm:$0xff]
        %v190 = vld [vmem:[%s150 + $0x68] sm:$0xff]
        %v191 = vld [vmem:[%s150 + $0x70] sm:$0xff]
        %v192 = vld [vmem:[%s150 + $0x78] sm:$0xff]
        %v193 = vld [vmem:[%s150 + $0x80] sm:$0xff]
        %v194 = vld [vmem:[%s150 + $0x88] sm:$0xff]
        %v195 = vld [vmem:[%s150 + $0x90] sm:$0xff]
        %v196 = vld [vmem:[%s150 + $0x98] sm:$0xff]
        %v197 = vld [vmem:[%s150 + $0xa0] sm:$0xff]
        %v198 = vld [vmem:[%s150 + $0xa8] sm:$0xff]
        %v199 = vld [vmem:[%s150 + $0xb0] sm:$0xff]
        %v200 = vld [vmem:[%s150 + $0xb8] sm:$0xff]
        %v201 = vld [vmem:[%s150 + $0xc0] sm:$0xff]
        %v202 = vld [vmem:[%s150 + $0xc8] sm:$0xff]
        %v203 = vld [vmem:[%s150 + $0xd0] sm:$0xff]
        %v204 = vld [vmem:[%s150 + $0xd8] sm:$0xff]
        %v205 = vld [vmem:[%s150 + $0xe0] sm:$0xff]
        %v206 = vld [vmem:[%s150 + $0xe8] sm:$0xff]
        %v207 = vld [vmem:[%s150 + $0xf0] sm:$0xff]
        %v208 = vld [vmem:[%s150 + $0xf8] sm:$0xff]
        %v209 = vld [vmem:[%s150 + $0x100] sm:$0xff]
        %v210 = vld [vmem:[%s150 + $0x108] sm:$0xff]
        %v211 = vld [vmem:[%s150 + $0x110] sm:$0xff]
        %v212 = vld [vmem:[%s150 + $0x118] sm:$0xff]
        %v213 = vld [vmem:[%s150 + $0x120] sm:$0xff]
        %v214 = vld [vmem:[%s150 + $0x128] sm:$0xff]
        %v215 = vld [vmem:[%s150 + $0x130] sm:$0xff]
        %v216 = vld [vmem:[%s150 + $0x138] sm:$0xff]
        %v217 = vld [vmem:[%s150 + $0x140] sm:$0xff]
        %v218 = vld [vmem:[%s150 + $0x148] sm:$0xff]
        %v219 = vld [vmem:[%s150 + $0x150] sm:$0xff]
        %v220 = vld [vmem:[%s150 + $0x158] sm:$0xff]
        %v221 = vld [vmem:[%s150 + $0x160] sm:$0xff]
        %v222 = vld [vmem:[%s150 + $0x168] sm:$0xff]
        %v223 = vld [vmem:[%s150 + $0x170] sm:$0xff]
        %v224 = vld [vmem:[%s150 + $0x178] sm:$0xff]
        %v225 = vld [vmem:[%s150 + $0x180] sm:$0xff]
        %v226 = vld [vmem:[%s150 + $0x188] sm:$0xff]
        %v227 = vld [vmem:[%s150 + $0x190] sm:$0xff]
        %v228 = vld [vmem:[%s150 + $0x198] sm:$0xff]
        %v229 = vld [vmem:[%s150 + $0x1a0] sm:$0xff]
        %v230 = vld [vmem:[%s150 + $0x1a8] sm:$0xff]
        %v231 = vld [vmem:[%s150 + $0x1b0] sm:$0xff]
        %v232 = vld [vmem:[%s150 + $0x1b8] sm:$0xff]
        %v233 = vld [vmem:[%s150 + $0x1c0] sm:$0xff]
        %v234 = vld [vmem:[%s150 + $0x1c8] sm:$0xff]
        %v235 = vld [vmem:[%s150 + $0x1d0] sm:$0xff]
        %v236 = vld [vmem:[%s150 + $0x1d8] sm:$0xff]
        %v237 = vld [vmem:[%s150 + $0x1e0] sm:$0xff]
        %v238 = vld [vmem:[%s150 + $0x1e8] sm:$0xff]
        %v239 = vld [vmem:[%s150 + $0x1f0] sm:$0xff]
        %v240 = vld [vmem:[%s150 + $0x1f8] sm:$0xff]
        %s241 = sadd.s32 %s176, 512
        %p242 = scmp.le.s32.totalorder %s241, 16
        // Predicated region
        $region33: #{_observe.1} parent=31 // pred_check
          %p243 = pneg %p242
        $region34: #{_observe.1} parent=31 // pred_check_branch
          %245 = sbr.rel (%p243) target = $region36
        $region35: #{_observe.1} parent=31 // pred_region
          %v246 = vld [vmem:[#allocation2] sm:$0xff]
          %v247 = vmin.f32 %v177, %v181
          %v248 = vmin.f32 %v178, %v182
          %v249 = vmin.f32 %v179, %v183
          %v250 = vmin.f32 %v180, %v184
          %v251 = vmin.f32 %v247, %v185
          %v252 = vmin.f32 %v248, %v186
          %v253 = vmin.f32 %v249, %v187
          %v254 = vmin.f32 %v250, %v188
          %v255 = vmin.f32 %v251, %v189
          %v256 = vmin.f32 %v252, %v190
          %v257 = vmin.f32 %v253, %v191
          %v258 = vmin.f32 %v254, %v192
          %v259 = vmin.f32 %v255, %v193
          %v260 = vmin.f32 %v256, %v194
          %v261 = vmin.f32 %v257, %v195
          %v262 = vmin.f32 %v258, %v196
          %v263 = vmin.f32 %v259, %v197
          %v264 = vmin.f32 %v260, %v198
          %v265 = vmin.f32 %v261, %v199
          %v266 = vmin.f32 %v262, %v200
          %v267 = vmin.f32 %v263, %v201
          %v268 = vmin.f32 %v264, %v202
          %v269 = vmin.f32 %v265, %v203
          %v270 = vmin.f32 %v266, %v204
          %v271 = vmin.f32 %v267, %v205
          %v272 = vmin.f32 %v268, %v206
          %v273 = vmin.f32 %v269, %v207
          %v274 = vmin.f32 %v270, %v208
          %v275 = vmin.f32 %v271, %v209
          %v276 = vmin.f32 %v272, %v210
          %v277 = vmin.f32 %v273, %v211
          %v278 = vmin.f32 %v274, %v212
          %v279 = vmin.f32 %v275, %v213
          %v280 = vmin.f32 %v276, %v214
          %v281 = vmin.f32 %v277, %v215
          %v282 = vmin.f32 %v278, %v216
          %v283 = vmin.f32 %v279, %v217
          %v284 = vmin.f32 %v280, %v218
          %v285 = vmin.f32 %v281, %v219
          %v286 = vmin.f32 %v282, %v220
          %v287 = vmin.f32 %v283, %v221
          %v288 = vmin.f32 %v284, %v222
          %v289 = vmin.f32 %v285, %v223
          %v290 = vmin.f32 %v286, %v224
          %v291 = vmin.f32 %v287, %v225
          %v292 = vmin.f32 %v288, %v226
          %v293 = vmin.f32 %v289, %v227
          %v294 = vmin.f32 %v290, %v228
          %v295 = vmin.f32 %v291, %v229
          %v296 = vmin.f32 %v292, %v230
          %v297 = vmin.f32 %v293, %v231
          %v298 = vmin.f32 %v294, %v232
          %v299 = vmin.f32 %v295, %v233
          %v300 = vmin.f32 %v296, %v234
          %v301 = vmin.f32 %v297, %v235
          %v302 = vmin.f32 %v298, %v236
          %v303 = vmin.f32 %v299, %v237
          %v304 = vmin.f32 %v300, %v238
          %v305 = vmin.f32 %v301, %v239
          %v306 = vmin.f32 %v302, %v240
          %v307 = vmin.f32 %v303, %v304
          %v308 = vmin.f32 %v305, %v306
          %v309 = vmin.f32 %v307, %v308
          %v310 = vmin.f32 %v246, %v309
          %311 = vst [vmem:[#allocation2] sm:$0xff] %v310
          %v312 = vld [vmem:[#allocation3] sm:$0xff]
          %v313 = vmax.f32 %v177, %v181
          %v314 = vmax.f32 %v178, %v182
          %v315 = vmax.f32 %v179, %v183
          %v316 = vmax.f32 %v180, %v184
          %v317 = vmax.f32 %v313, %v185
          %v318 = vmax.f32 %v314, %v186
          %v319 = vmax.f32 %v315, %v187
          %v320 = vmax.f32 %v316, %v188
          %v321 = vmax.f32 %v317, %v189
          %v322 = vmax.f32 %v318, %v190
          %v323 = vmax.f32 %v319, %v191
          %v324 = vmax.f32 %v320, %v192
          %v325 = vmax.f32 %v321, %v193
          %v326 = vmax.f32 %v322, %v194
          %v327 = vmax.f32 %v323, %v195
          %v328 = vmax.f32 %v324, %v196
          %v329 = vmax.f32 %v325, %v197
          %v330 = vmax.f32 %v326, %v198
          %v331 = vmax.f32 %v327, %v199
          %v332 = vmax.f32 %v328, %v200
          %v333 = vmax.f32 %v329, %v201
          %v334 = vmax.f32 %v330, %v202
          %v335 = vmax.f32 %v331, %v203
          %v336 = vmax.f32 %v332, %v204
          %v337 = vmax.f32 %v333, %v205
          %v338 = vmax.f32 %v334, %v206
          %v339 = vmax.f32 %v335, %v207
          %v340 = vmax.f32 %v336, %v208
          %v341 = vmax.f32 %v337, %v209
          %v342 = vmax.f32 %v338, %v210
          %v343 = vmax.f32 %v339, %v211
          %v344 = vmax.f32 %v340, %v212
          %v345 = vmax.f32 %v341, %v213
          %v346 = vmax.f32 %v342, %v214
          %v347 = vmax.f32 %v343, %v215
          %v348 = vmax.f32 %v344, %v216
          %v349 = vmax.f32 %v345, %v217
          %v350 = vmax.f32 %v346, %v218
          %v351 = vmax.f32 %v347, %v219
          %v352 = vmax.f32 %v348, %v220
          %v353 = vmax.f32 %v349, %v221
          %v354 = vmax.f32 %v350, %v222
          %v355 = vmax.f32 %v351, %v223
          %v356 = vmax.f32 %v352, %v224
          %v357 = vmax.f32 %v353, %v225
          %v358 = vmax.f32 %v354, %v226
          %v359 = vmax.f32 %v355, %v227
          %v360 = vmax.f32 %v356, %v228
          %v361 = vmax.f32 %v357, %v229
          %v362 = vmax.f32 %v358, %v230
          %v363 = vmax.f32 %v359, %v231
          %v364 = vmax.f32 %v360, %v232
          %v365 = vmax.f32 %v361, %v233
          %v366 = vmax.f32 %v362, %v234
          %v367 = vmax.f32 %v363, %v235
          %v368 = vmax.f32 %v364, %v236
          %v369 = vmax.f32 %v365, %v237
          %v370 = vmax.f32 %v366, %v238
          %v371 = vmax.f32 %v367, %v239
          %v372 = vmax.f32 %v368, %v240
          %v373 = vmax.f32 %v369, %v370
          %v374 = vmax.f32 %v371, %v372
          %v375 = vmax.f32 %v373, %v374
          %v376 = vmax.f32 %v312, %v375
          %377 = vst [vmem:[#allocation3] sm:$0xff] %v376
          %v378 = vld [vmem:[#allocation4] sm:$0xff]
          %v379 = vadd.f32 %v177, %v178
          %v380 = vadd.f32 %v379, %v179
          %v381 = vadd.f32 %v380, %v180
          %v382 = vadd.f32 %v381, %v181
          %v383 = vadd.f32 %v382, %v182
          %v384 = vadd.f32 %v383, %v183
          %v385 = vadd.f32 %v384, %v184
          %v386 = vadd.f32 %v385, %v185
          %v387 = vadd.f32 %v386, %v186
          %v388 = vadd.f32 %v387, %v187
          %v389 = vadd.f32 %v388, %v188
          %v390 = vadd.f32 %v389, %v189
          %v391 = vadd.f32 %v390, %v190
          %v392 = vadd.f32 %v391, %v191
          %v393 = vadd.f32 %v392, %v192
          %v394 = vadd.f32 %v393, %v193
          %v395 = vadd.f32 %v394, %v194
          %v396 = vadd.f32 %v395, %v195
          %v397 = vadd.f32 %v396, %v196
          %v398 = vadd.f32 %v397, %v197
          %v399 = vadd.f32 %v398, %v198
          %v400 = vadd.f32 %v399, %v199
          %v401 = vadd.f32 %v400, %v200
          %v402 = vadd.f32 %v401, %v201
          %v403 = vadd.f32 %v402, %v202
          %v404 = vadd.f32 %v403, %v203
          %v405 = vadd.f32 %v404, %v204
          %v406 = vadd.f32 %v405, %v205
          %v407 = vadd.f32 %v406, %v206
          %v408 = vadd.f32 %v407, %v207
          %v409 = vadd.f32 %v408, %v208
          %v410 = vadd.f32 %v409, %v209
          %v411 = vadd.f32 %v410, %v210
          %v412 = vadd.f32 %v411, %v211
          %v413 = vadd.f32 %v412, %v212
          %v414 = vadd.f32 %v413, %v213
          %v415 = vadd.f32 %v414, %v214
          %v416 = vadd.f32 %v415, %v215
          %v417 = vadd.f32 %v416, %v216
          %v418 = vadd.f32 %v417, %v217
          %v419 = vadd.f32 %v418, %v218
          %v420 = vadd.f32 %v419, %v219
          %v421 = vadd.f32 %v420, %v220
          %v422 = vadd.f32 %v421, %v221
          %v423 = vadd.f32 %v422, %v222
          %v424 = vadd.f32 %v423, %v223
          %v425 = vadd.f32 %v424, %v224
          %v426 = vadd.f32 %v425, %v225
          %v427 = vadd.f32 %v426, %v226
          %v428 = vadd.f32 %v427, %v227
          %v429 = vadd.f32 %v428, %v228
          %v430 = vadd.f32 %v429, %v229
          %v431 = vadd.f32 %v430, %v230
          %v432 = vadd.f32 %v431, %v231
          %v433 = vadd.f32 %v432, %v232
          %v434 = vadd.f32 %v433, %v233
          %v435 = vadd.f32 %v434, %v234
          %v436 = vadd.f32 %v435, %v235
          %v437 = vadd.f32 %v436, %v236
          %v438 = vadd.f32 %v437, %v237
          %v439 = vadd.f32 %v438, %v238
          %v440 = vadd.f32 %v439, %v239
          %v441 = vadd.f32 %v440, %v240
          %v442 = vadd.f32 %v378, %v441
          %443 = vst [vmem:[#allocation4] sm:$0xff] %v442
          %v444 = vld [vmem:[#allocation5] sm:$0xff]
          %v445 = vmul.f32 %v177, %v177
          %v446 = vmul.f32 %v178, %v178
          %v447 = vmul.f32 %v179, %v179
          %v448 = vmul.f32 %v180, %v180
          %v449 = vmul.f32 %v181, %v181
          %v450 = vmul.f32 %v182, %v182
          %v451 = vmul.f32 %v183, %v183
          %v452 = vmul.f32 %v184, %v184
          %v453 = vmul.f32 %v185, %v185
          %v454 = vmul.f32 %v186, %v186
          %v455 = vmul.f32 %v187, %v187
          %v456 = vmul.f32 %v188, %v188
          %v457 = vmul.f32 %v189, %v189
          %v458 = vmul.f32 %v190, %v190
          %v459 = vmul.f32 %v191, %v191
          %v460 = vmul.f32 %v192, %v192
          %v461 = vmul.f32 %v193, %v193
          %v462 = vmul.f32 %v194, %v194
          %v463 = vmul.f32 %v195, %v195
          %v464 = vmul.f32 %v196, %v196
          %v465 = vmul.f32 %v197, %v197
          %v466 = vmul.f32 %v198, %v198
          %v467 = vmul.f32 %v199, %v199
          %v468 = vmul.f32 %v200, %v200
          %v469 = vmul.f32 %v201, %v201
          %v470 = vmul.f32 %v202, %v202
          %v471 = vmul.f32 %v203, %v203
          %v472 = vmul.f32 %v204, %v204
          %v473 = vmul.f32 %v205, %v205
          %v474 = vmul.f32 %v206, %v206
          %v475 = vmul.f32 %v207, %v207
          %v476 = vmul.f32 %v208, %v208
          %v477 = vmul.f32 %v209, %v209
          %v478 = vmul.f32 %v210, %v210
          %v479 = vmul.f32 %v211, %v211
          %v480 = vmul.f32 %v212, %v212
          %v481 = vmul.f32 %v213, %v213
          %v482 = vmul.f32 %v214, %v214
          %v483 = vmul.f32 %v215, %v215
          %v484 = vmul.f32 %v216, %v216
          %v485 = vmul.f32 %v217, %v217
          %v486 = vmul.f32 %v218, %v218
          %v487 = vmul.f32 %v219, %v219
          %v488 = vmul.f32 %v220, %v220
          %v489 = vmul.f32 %v221, %v221
          %v490 = vmul.f32 %v222, %v222
          %v491 = vmul.f32 %v223, %v223
          %v492 = vmul.f32 %v224, %v224
          %v493 = vmul.f32 %v225, %v225
          %v494 = vmul.f32 %v226, %v226
          %v495 = vmul.f32 %v227, %v227
          %v496 = vmul.f32 %v228, %v228
          %v497 = vmul.f32 %v229, %v229
          %v498 = vmul.f32 %v230, %v230
          %v499 = vmul.f32 %v231, %v231
          %v500 = vmul.f32 %v232, %v232
          %v501 = vmul.f32 %v233, %v233
          %v502 = vmul.f32 %v234, %v234
          %v503 = vmul.f32 %v235, %v235
          %v504 = vmul.f32 %v236, %v236
          %v505 = vmul.f32 %v237, %v237
          %v506 = vmul.f32 %v238, %v238
          %v507 = vmul.f32 %v239, %v239
          %v508 = vmul.f32 %v240, %v240
          %v509 = vadd.f32 %v445, %v446
          %v510 = vadd.f32 %v509, %v447
          %v511 = vadd.f32 %v510, %v448
          %v512 = vadd.f32 %v511, %v449
          %v513 = vadd.f32 %v512, %v450
          %v514 = vadd.f32 %v513, %v451
          %v515 = vadd.f32 %v514, %v452
          %v516 = vadd.f32 %v515, %v453
          %v517 = vadd.f32 %v516, %v454
          %v518 = vadd.f32 %v517, %v455
          %v519 = vadd.f32 %v518, %v456
          %v520 = vadd.f32 %v519, %v457
          %v521 = vadd.f32 %v520, %v458
          %v522 = vadd.f32 %v521, %v459
          %v523 = vadd.f32 %v522, %v460
          %v524 = vadd.f32 %v523, %v461
          %v525 = vadd.f32 %v524, %v462
          %v526 = vadd.f32 %v525, %v463
          %v527 = vadd.f32 %v526, %v464
          %v528 = vadd.f32 %v527, %v465
          %v529 = vadd.f32 %v528, %v466
          %v530 = vadd.f32 %v529, %v467
          %v531 = vadd.f32 %v530, %v468
          %v532 = vadd.f32 %v531, %v469
          %v533 = vadd.f32 %v532, %v470
          %v534 = vadd.f32 %v533, %v471
          %v535 = vadd.f32 %v534, %v472
          %v536 = vadd.f32 %v535, %v473
          %v537 = vadd.f32 %v536, %v474
          %v538 = vadd.f32 %v537, %v475
          %v539 = vadd.f32 %v538, %v476
          %v540 = vadd.f32 %v539, %v477
          %v541 = vadd.f32 %v540, %v478
          %v542 = vadd.f32 %v541, %v479
          %v543 = vadd.f32 %v542, %v480
          %v544 = vadd.f32 %v543, %v481
          %v545 = vadd.f32 %v544, %v482
          %v546 = vadd.f32 %v545, %v483
          %v547 = vadd.f32 %v546, %v484
          %v548 = vadd.f32 %v547, %v485
          %v549 = vadd.f32 %v548, %v486
          %v550 = vadd.f32 %v549, %v487
          %v551 = vadd.f32 %v550, %v488
          %v552 = vadd.f32 %v551, %v489
          %v553 = vadd.f32 %v552, %v490
          %v554 = vadd.f32 %v553, %v491
          %v555 = vadd.f32 %v554, %v492
          %v556 = vadd.f32 %v555, %v493
          %v557 = vadd.f32 %v556, %v494
          %v558 = vadd.f32 %v557, %v495
          %v559 = vadd.f32 %v558, %v496
          %v560 = vadd.f32 %v559, %v497
          %v561 = vadd.f32 %v560, %v498
          %v562 = vadd.f32 %v561, %v499
          %v563 = vadd.f32 %v562, %v500
          %v564 = vadd.f32 %v563, %v501
          %v565 = vadd.f32 %v564, %v502
          %v566 = vadd.f32 %v565, %v503
          %v567 = vadd.f32 %v566, %v504
          %v568 = vadd.f32 %v567, %v505
          %v569 = vadd.f32 %v568, %v506
          %v570 = vadd.f32 %v569, %v507
          %v571 = vadd.f32 %v570, %v508
          %v572 = vadd.f32 %v444, %v571
          %573 = vst [vmem:[#allocation5] sm:$0xff] %v572
        $region36: #{_observe.1} parent=31 // pred_fallthru
          _
        %p574 = scmp.gt.s32.totalorder %s241, 16
        %p575 = scmp.lt.s32.totalorder %s176, 16
        %p576 = pnand %p574, %p575
        %p577 = pneg %p576
        // Predicated region
        $region37: #{_observe.1} parent=31 // pred_check
          _
        $region38: #{_observe.1} parent=31 // pred_check_branch
          %579 = sbr.rel (%p576) target = $region40
        $region39: #{_observe.1} parent=31 // pred_region
          %v580 = vlaneseq
          %v581 = vshrl.u32 %v580, 7
          %v582 = vadd.s32 %v581, 8
          %v583 = vadd.s32 %v581, 16
          %v584 = vadd.s32 %v581, 24
          %v585 = vadd.s32 %v581, 32
          %v586 = vadd.s32 %v581, 40
          %v587 = vadd.s32 %v581, 48
          %v588 = vadd.s32 %v581, 56
          %v589 = vadd.s32 %v581, 64
          %v590 = vadd.s32 %v581, 72
          %v591 = vadd.s32 %v581, 80
          %v592 = vadd.s32 %v581, 88
          %v593 = vadd.s32 %v581, 96
          %v594 = vadd.s32 %v581, 104
          %v595 = vadd.s32 %v581, 112
          %v596 = vadd.s32 %v581, 120
          %v597 = vadd.s32 %v581, 128
          %v598 = vadd.s32 %v581, 136
          %v599 = vadd.s32 %v581, 144
          %v600 = vadd.s32 %v581, 152
          %v601 = vadd.s32 %v581, 160
          %v602 = vadd.s32 %v581, 168
          %v603 = vadd.s32 %v581, 176
          %v604 = vadd.s32 %v581, 184
          %v605 = vadd.s32 %v581, 192
          %v606 = vadd.s32 %v581, 200
          %v607 = vadd.s32 %v581, 208
          %v608 = vadd.s32 %v581, 216
          %v609 = vadd.s32 %v581, 224
          %v610 = vadd.s32 %v581, 232
          %v611 = vadd.s32 %v581, 240
          %v612 = vadd.s32 %v581, 248
          %v613 = vadd.s32 %v581, 256
          %v614 = vadd.s32 %v581, 264
          %v615 = vadd.s32 %v581, 272
          %v616 = vadd.s32 %v581, 280
          %v617 = vadd.s32 %v581, 288
          %v618 = vadd.s32 %v581, 296
          %v619 = vadd.s32 %v581, 304
          %v620 = vadd.s32 %v581, 312
          %v621 = vadd.s32 %v581, 320
          %v622 = vadd.s32 %v581, 328
          %v623 = vadd.s32 %v581, 336
          %v624 = vadd.s32 %v581, 344
          %v625 = vadd.s32 %v581, 352
          %v626 = vadd.s32 %v581, 360
          %v627 = vadd.s32 %v581, 368
          %v628 = vadd.s32 %v581, 376
          %v629 = vadd.s32 %v581, 384
          %v630 = vadd.s32 %v581, 392
          %v631 = vadd.s32 %v581, 400
          %v632 = vadd.s32 %v581, 408
          %v633 = vadd.s32 %v581, 416
          %v634 = vadd.s32 %v581, 424
          %v635 = vadd.s32 %v581, 432
          %v636 = vadd.s32 %v581, 440
          %v637 = vadd.s32 %v581, 448
          %v638 = vadd.s32 %v581, 456
          %v639 = vadd.s32 %v581, 464
          %v640 = vadd.s32 %v581, 472
          %v641 = vadd.s32 %v581, 480
          %v642 = vadd.s32 %v581, 488
          %v643 = vadd.s32 %v581, 496
          %v644 = vadd.s32 %v581, 504
          %v645 = vstv %s176
          %v646 = vadd.s32 %v645, %v581
          %v647 = vadd.s32 %v645, %v582
          %v648 = vadd.s32 %v645, %v583
          %v649 = vadd.s32 %v645, %v584
          %v650 = vadd.s32 %v645, %v585
          %v651 = vadd.s32 %v645, %v586
          %v652 = vadd.s32 %v645, %v587
          %v653 = vadd.s32 %v645, %v588
          %v654 = vadd.s32 %v645, %v589
          %v655 = vadd.s32 %v645, %v590
          %v656 = vadd.s32 %v645, %v591
          %v657 = vadd.s32 %v645, %v592
          %v658 = vadd.s32 %v645, %v593
          %v659 = vadd.s32 %v645, %v594
          %v660 = vadd.s32 %v645, %v595
          %v661 = vadd.s32 %v645, %v596
          %v662 = vadd.s32 %v645, %v597
          %v663 = vadd.s32 %v645, %v598
          %v664 = vadd.s32 %v645, %v599
          %v665 = vadd.s32 %v645, %v600
          %v666 = vadd.s32 %v645, %v601
          %v667 = vadd.s32 %v645, %v602
          %v668 = vadd.s32 %v645, %v603
          %v669 = vadd.s32 %v645, %v604
          %v670 = vadd.s32 %v645, %v605
          %v671 = vadd.s32 %v645, %v606
          %v672 = vadd.s32 %v645, %v607
          %v673 = vadd.s32 %v645, %v608
          %v674 = vadd.s32 %v645, %v609
          %v675 = vadd.s32 %v645, %v610
          %v676 = vadd.s32 %v645, %v611
          %v677 = vadd.s32 %v645, %v612
          %v678 = vadd.s32 %v645, %v613
          %v679 = vadd.s32 %v645, %v614
          %v680 = vadd.s32 %v645, %v615
          %v681 = vadd.s32 %v645, %v616
          %v682 = vadd.s32 %v645, %v617
          %v683 = vadd.s32 %v645, %v618
          %v684 = vadd.s32 %v645, %v619
          %v685 = vadd.s32 %v645, %v620
          %v686 = vadd.s32 %v645, %v621
          %v687 = vadd.s32 %v645, %v622
          %v688 = vadd.s32 %v645, %v623
          %v689 = vadd.s32 %v645, %v624
          %v690 = vadd.s32 %v645, %v625
          %v691 = vadd.s32 %v645, %v626
          %v692 = vadd.s32 %v645, %v627
          %v693 = vadd.s32 %v645, %v628
          %v694 = vadd.s32 %v645, %v629
          %v695 = vadd.s32 %v645, %v630
          %v696 = vadd.s32 %v645, %v631
          %v697 = vadd.s32 %v645, %v632
          %v698 = vadd.s32 %v645, %v633
          %v699 = vadd.s32 %v645, %v634
          %v700 = vadd.s32 %v645, %v635
          %v701 = vadd.s32 %v645, %v636
          %v702 = vadd.s32 %v645, %v637
          %v703 = vadd.s32 %v645, %v638
          %v704 = vadd.s32 %v645, %v639
          %v705 = vadd.s32 %v645, %v640
          %v706 = vadd.s32 %v645, %v641
          %v707 = vadd.s32 %v645, %v642
          %v708 = vadd.s32 %v645, %v643
          %v709 = vadd.s32 %v645, %v644
          %vm710 = vcmp.lt.s32.totalorder %v646, 16
          %vm711 = vcmp.lt.s32.totalorder %v647, 16
          %vm712 = vcmp.lt.s32.totalorder %v648, 16
          %vm713 = vcmp.lt.s32.totalorder %v649, 16
          %vm714 = vcmp.lt.s32.totalorder %v650, 16
          %vm715 = vcmp.lt.s32.totalorder %v651, 16
          %vm716 = vcmp.lt.s32.totalorder %v652, 16
          %vm717 = vcmp.lt.s32.totalorder %v653, 16
          %vm718 = vcmp.lt.s32.totalorder %v654, 16
          %vm719 = vcmp.lt.s32.totalorder %v655, 16
          %vm720 = vcmp.lt.s32.totalorder %v656, 16
          %vm721 = vcmp.lt.s32.totalorder %v657, 16
          %vm722 = vcmp.lt.s32.totalorder %v658, 16
          %vm723 = vcmp.lt.s32.totalorder %v659, 16
          %vm724 = vcmp.lt.s32.totalorder %v660, 16
          %vm725 = vcmp.lt.s32.totalorder %v661, 16
          %vm726 = vcmp.lt.s32.totalorder %v662, 16
          %vm727 = vcmp.lt.s32.totalorder %v663, 16
          %vm728 = vcmp.lt.s32.totalorder %v664, 16
          %vm729 = vcmp.lt.s32.totalorder %v665, 16
          %vm730 = vcmp.lt.s32.totalorder %v666, 16
          %vm731 = vcmp.lt.s32.totalorder %v667, 16
          %vm732 = vcmp.lt.s32.totalorder %v668, 16
          %vm733 = vcmp.lt.s32.totalorder %v669, 16
          %vm734 = vcmp.lt.s32.totalorder %v670, 16
          %vm735 = vcmp.lt.s32.totalorder %v671, 16
          %vm736 = vcmp.lt.s32.totalorder %v672, 16
          %vm737 = vcmp.lt.s32.totalorder %v673, 16
          %vm738 = vcmp.lt.s32.totalorder %v674, 16
          %vm739 = vcmp.lt.s32.totalorder %v675, 16
          %vm740 = vcmp.lt.s32.totalorder %v676, 16
          %vm741 = vcmp.lt.s32.totalorder %v677, 16
          %vm742 = vcmp.lt.s32.totalorder %v678, 16
          %vm743 = vcmp.lt.s32.totalorder %v679, 16
          %vm744 = vcmp.lt.s32.totalorder %v680, 16
          %vm745 = vcmp.lt.s32.totalorder %v681, 16
          %vm746 = vcmp.lt.s32.totalorder %v682, 16
          %vm747 = vcmp.lt.s32.totalorder %v683, 16
          %vm748 = vcmp.lt.s32.totalorder %v684, 16
          %vm749 = vcmp.lt.s32.totalorder %v685, 16
          %vm750 = vcmp.lt.s32.totalorder %v686, 16
          %vm751 = vcmp.lt.s32.totalorder %v687, 16
          %vm752 = vcmp.lt.s32.totalorder %v688, 16
          %vm753 = vcmp.lt.s32.totalorder %v689, 16
          %vm754 = vcmp.lt.s32.totalorder %v690, 16
          %vm755 = vcmp.lt.s32.totalorder %v691, 16
          %vm756 = vcmp.lt.s32.totalorder %v692, 16
          %vm757 = vcmp.lt.s32.totalorder %v693, 16
          %vm758 = vcmp.lt.s32.totalorder %v694, 16
          %vm759 = vcmp.lt.s32.totalorder %v695, 16
          %vm760 = vcmp.lt.s32.totalorder %v696, 16
          %vm761 = vcmp.lt.s32.totalorder %v697, 16
          %vm762 = vcmp.lt.s32.totalorder %v698, 16
          %vm763 = vcmp.lt.s32.totalorder %v699, 16
          %vm764 = vcmp.lt.s32.totalorder %v700, 16
          %vm765 = vcmp.lt.s32.totalorder %v701, 16
          %vm766 = vcmp.lt.s32.totalorder %v702, 16
          %vm767 = vcmp.lt.s32.totalorder %v703, 16
          %vm768 = vcmp.lt.s32.totalorder %v704, 16
          %vm769 = vcmp.lt.s32.totalorder %v705, 16
          %vm770 = vcmp.lt.s32.totalorder %v706, 16
          %vm771 = vcmp.lt.s32.totalorder %v707, 16
          %vm772 = vcmp.lt.s32.totalorder %v708, 16
          %vm773 = vcmp.lt.s32.totalorder %v709, 16
          %v774 = vsel %vm710, %v177, inf
          %v775 = vsel %vm711, %v178, inf
          %v776 = vsel %vm712, %v179, inf
          %v777 = vsel %vm713, %v180, inf
          %v778 = vsel %vm714, %v181, inf
          %v779 = vsel %vm715, %v182, inf
          %v780 = vsel %vm716, %v183, inf
          %v781 = vsel %vm717, %v184, inf
          %v782 = vsel %vm718, %v185, inf
          %v783 = vsel %vm719, %v186, inf
          %v784 = vsel %vm720, %v187, inf
          %v785 = vsel %vm721, %v188, inf
          %v786 = vsel %vm722, %v189, inf
          %v787 = vsel %vm723, %v190, inf
          %v788 = vsel %vm724, %v191, inf
          %v789 = vsel %vm725, %v192, inf
          %v790 = vsel %vm726, %v193, inf
          %v791 = vsel %vm727, %v194, inf
          %v792 = vsel %vm728, %v195, inf
          %v793 = vsel %vm729, %v196, inf
          %v794 = vsel %vm730, %v197, inf
          %v795 = vsel %vm731, %v198, inf
          %v796 = vsel %vm732, %v199, inf
          %v797 = vsel %vm733, %v200, inf
          %v798 = vsel %vm734, %v201, inf
          %v799 = vsel %vm735, %v202, inf
          %v800 = vsel %vm736, %v203, inf
          %v801 = vsel %vm737, %v204, inf
          %v802 = vsel %vm738, %v205, inf
          %v803 = vsel %vm739, %v206, inf
          %v804 = vsel %vm740, %v207, inf
          %v805 = vsel %vm741, %v208, inf
          %v806 = vsel %vm742, %v209, inf
          %v807 = vsel %vm743, %v210, inf
          %v808 = vsel %vm744, %v211, inf
          %v809 = vsel %vm745, %v212, inf
          %v810 = vsel %vm746, %v213, inf
          %v811 = vsel %vm747, %v214, inf
          %v812 = vsel %vm748, %v215, inf
          %v813 = vsel %vm749, %v216, inf
          %v814 = vsel %vm750, %v217, inf
          %v815 = vsel %vm751, %v218, inf
          %v816 = vsel %vm752, %v219, inf
          %v817 = vsel %vm753, %v220, inf
          %v818 = vsel %vm754, %v221, inf
          %v819 = vsel %vm755, %v222, inf
          %v820 = vsel %vm756, %v223, inf
          %v821 = vsel %vm757, %v224, inf
          %v822 = vsel %vm758, %v225, inf
          %v823 = vsel %vm759, %v226, inf
          %v824 = vsel %vm760, %v227, inf
          %v825 = vsel %vm761, %v228, inf
          %v826 = vsel %vm762, %v229, inf
          %v827 = vsel %vm763, %v230, inf
          %v828 = vsel %vm764, %v231, inf
          %v829 = vsel %vm765, %v232, inf
          %v830 = vsel %vm766, %v233, inf
          %v831 = vsel %vm767, %v234, inf
          %v832 = vsel %vm768, %v235, inf
          %v833 = vsel %vm769, %v236, inf
          %v834 = vsel %vm770, %v237, inf
          %v835 = vsel %vm771, %v238, inf
          %v836 = vsel %vm772, %v239, inf
          %v837 = vsel %vm773, %v240, inf
          %v838 = vsel %vm710, %v177, -inf
          %v839 = vsel %vm711, %v178, -inf
          %v840 = vsel %vm712, %v179, -inf
          %v841 = vsel %vm713, %v180, -inf
          %v842 = vsel %vm714, %v181, -inf
          %v843 = vsel %vm715, %v182, -inf
          %v844 = vsel %vm716, %v183, -inf
          %v845 = vsel %vm717, %v184, -inf
          %v846 = vsel %vm718, %v185, -inf
          %v847 = vsel %vm719, %v186, -inf
          %v848 = vsel %vm720, %v187, -inf
          %v849 = vsel %vm721, %v188, -inf
          %v850 = vsel %vm722, %v189, -inf
          %v851 = vsel %vm723, %v190, -inf
          %v852 = vsel %vm724, %v191, -inf
          %v853 = vsel %vm725, %v192, -inf
          %v854 = vsel %vm726, %v193, -inf
          %v855 = vsel %vm727, %v194, -inf
          %v856 = vsel %vm728, %v195, -inf
          %v857 = vsel %vm729, %v196, -inf
          %v858 = vsel %vm730, %v197, -inf
          %v859 = vsel %vm731, %v198, -inf
          %v860 = vsel %vm732, %v199, -inf
          %v861 = vsel %vm733, %v200, -inf
          %v862 = vsel %vm734, %v201, -inf
          %v863 = vsel %vm735, %v202, -inf
          %v864 = vsel %vm736, %v203, -inf
          %v865 = vsel %vm737, %v204, -inf
          %v866 = vsel %vm738, %v205, -inf
          %v867 = vsel %vm739, %v206, -inf
          %v868 = vsel %vm740, %v207, -inf
          %v869 = vsel %vm741, %v208, -inf
          %v870 = vsel %vm742, %v209, -inf
          %v871 = vsel %vm743, %v210, -inf
          %v872 = vsel %vm744, %v211, -inf
          %v873 = vsel %vm745, %v212, -inf
          %v874 = vsel %vm746, %v213, -inf
          %v875 = vsel %vm747, %v214, -inf
          %v876 = vsel %vm748, %v215, -inf
          %v877 = vsel %vm749, %v216, -inf
          %v878 = vsel %vm750, %v217, -inf
          %v879 = vsel %vm751, %v218, -inf
          %v880 = vsel %vm752, %v219, -inf
          %v881 = vsel %vm753, %v220, -inf
          %v882 = vsel %vm754, %v221, -inf
          %v883 = vsel %vm755, %v222, -inf
          %v884 = vsel %vm756, %v223, -inf
          %v885 = vsel %vm757, %v224, -inf
          %v886 = vsel %vm758, %v225, -inf
          %v887 = vsel %vm759, %v226, -inf
          %v888 = vsel %vm760, %v227, -inf
          %v889 = vsel %vm761, %v228, -inf
          %v890 = vsel %vm762, %v229, -inf
          %v891 = vsel %vm763, %v230, -inf
          %v892 = vsel %vm764, %v231, -inf
          %v893 = vsel %vm765, %v232, -inf
          %v894 = vsel %vm766, %v233, -inf
          %v895 = vsel %vm767, %v234, -inf
          %v896 = vsel %vm768, %v235, -inf
          %v897 = vsel %vm769, %v236, -inf
          %v898 = vsel %vm770, %v237, -inf
          %v899 = vsel %vm771, %v238, -inf
          %v900 = vsel %vm772, %v239, -inf
          %v901 = vsel %vm773, %v240, -inf
          %v902 = vsel %vm710, %v177, 0.0
          %v903 = vsel %vm711, %v178, 0.0
          %v904 = vsel %vm712, %v179, 0.0
          %v905 = vsel %vm713, %v180, 0.0
          %v906 = vsel %vm714, %v181, 0.0
          %v907 = vsel %vm715, %v182, 0.0
          %v908 = vsel %vm716, %v183, 0.0
          %v909 = vsel %vm717, %v184, 0.0
          %v910 = vsel %vm718, %v185, 0.0
          %v911 = vsel %vm719, %v186, 0.0
          %v912 = vsel %vm720, %v187, 0.0
          %v913 = vsel %vm721, %v188, 0.0
          %v914 = vsel %vm722, %v189, 0.0
          %v915 = vsel %vm723, %v190, 0.0
          %v916 = vsel %vm724, %v191, 0.0
          %v917 = vsel %vm725, %v192, 0.0
          %v918 = vsel %vm726, %v193, 0.0
          %v919 = vsel %vm727, %v194, 0.0
          %v920 = vsel %vm728, %v195, 0.0
          %v921 = vsel %vm729, %v196, 0.0
          %v922 = vsel %vm730, %v197, 0.0
          %v923 = vsel %vm731, %v198, 0.0
          %v924 = vsel %vm732, %v199, 0.0
          %v925 = vsel %vm733, %v200, 0.0
          %v926 = vsel %vm734, %v201, 0.0
          %v927 = vsel %vm735, %v202, 0.0
          %v928 = vsel %vm736, %v203, 0.0
          %v929 = vsel %vm737, %v204, 0.0
          %v930 = vsel %vm738, %v205, 0.0
          %v931 = vsel %vm739, %v206, 0.0
          %v932 = vsel %vm740, %v207, 0.0
          %v933 = vsel %vm741, %v208, 0.0
          %v934 = vsel %vm742, %v209, 0.0
          %v935 = vsel %vm743, %v210, 0.0
          %v936 = vsel %vm744, %v211, 0.0
          %v937 = vsel %vm745, %v212, 0.0
          %v938 = vsel %vm746, %v213, 0.0
          %v939 = vsel %vm747, %v214, 0.0
          %v940 = vsel %vm748, %v215, 0.0
          %v941 = vsel %vm749, %v216, 0.0
          %v942 = vsel %vm750, %v217, 0.0
          %v943 = vsel %vm751, %v218, 0.0
          %v944 = vsel %vm752, %v219, 0.0
          %v945 = vsel %vm753, %v220, 0.0
          %v946 = vsel %vm754, %v221, 0.0
          %v947 = vsel %vm755, %v222, 0.0
          %v948 = vsel %vm756, %v223, 0.0
          %v949 = vsel %vm757, %v224, 0.0
          %v950 = vsel %vm758, %v225, 0.0
          %v951 = vsel %vm759, %v226, 0.0
          %v952 = vsel %vm760, %v227, 0.0
          %v953 = vsel %vm761, %v228, 0.0
          %v954 = vsel %vm762, %v229, 0.0
          %v955 = vsel %vm763, %v230, 0.0
          %v956 = vsel %vm764, %v231, 0.0
          %v957 = vsel %vm765, %v232, 0.0
          %v958 = vsel %vm766, %v233, 0.0
          %v959 = vsel %vm767, %v234, 0.0
          %v960 = vsel %vm768, %v235, 0.0
          %v961 = vsel %vm769, %v236, 0.0
          %v962 = vsel %vm770, %v237, 0.0
          %v963 = vsel %vm771, %v238, 0.0
          %v964 = vsel %vm772, %v239, 0.0
          %v965 = vsel %vm773, %v240, 0.0
          %v966 = vld [vmem:[#allocation2] sm:$0xff]
          %v967 = vmin.f32 %v774, %v778
          %v968 = vmin.f32 %v775, %v779
          %v969 = vmin.f32 %v776, %v780
          %v970 = vmin.f32 %v777, %v781
          %v971 = vmin.f32 %v967, %v782
          %v972 = vmin.f32 %v968, %v783
          %v973 = vmin.f32 %v969, %v784
          %v974 = vmin.f32 %v970, %v785
          %v975 = vmin.f32 %v971, %v786
          %v976 = vmin.f32 %v972, %v787
          %v977 = vmin.f32 %v973, %v788
          %v978 = vmin.f32 %v974, %v789
          %v979 = vmin.f32 %v975, %v790
          %v980 = vmin.f32 %v976, %v791
          %v981 = vmin.f32 %v977, %v792
          %v982 = vmin.f32 %v978, %v793
          %v983 = vmin.f32 %v979, %v794
          %v984 = vmin.f32 %v980, %v795
          %v985 = vmin.f32 %v981, %v796
          %v986 = vmin.f32 %v982, %v797
          %v987 = vmin.f32 %v983, %v798
          %v988 = vmin.f32 %v984, %v799
          %v989 = vmin.f32 %v985, %v800
          %v990 = vmin.f32 %v986, %v801
          %v991 = vmin.f32 %v987, %v802
          %v992 = vmin.f32 %v988, %v803
          %v993 = vmin.f32 %v989, %v804
          %v994 = vmin.f32 %v990, %v805
          %v995 = vmin.f32 %v991, %v806
          %v996 = vmin.f32 %v992, %v807
          %v997 = vmin.f32 %v993, %v808
          %v998 = vmin.f32 %v994, %v809
          %v999 = vmin.f32 %v995, %v810
          %v1000 = vmin.f32 %v996, %v811
          %v1001 = vmin.f32 %v997, %v812
          %v1002 = vmin.f32 %v998, %v813
          %v1003 = vmin.f32 %v999, %v814
          %v1004 = vmin.f32 %v1000, %v815
          %v1005 = vmin.f32 %v1001, %v816
          %v1006 = vmin.f32 %v1002, %v817
          %v1007 = vmin.f32 %v1003, %v818
          %v1008 = vmin.f32 %v1004, %v819
          %v1009 = vmin.f32 %v1005, %v820
          %v1010 = vmin.f32 %v1006, %v821
          %v1011 = vmin.f32 %v1007, %v822
          %v1012 = vmin.f32 %v1008, %v823
          %v1013 = vmin.f32 %v1009, %v824
          %v1014 = vmin.f32 %v1010, %v825
          %v1015 = vmin.f32 %v1011, %v826
          %v1016 = vmin.f32 %v1012, %v827
          %v1017 = vmin.f32 %v1013, %v828
          %v1018 = vmin.f32 %v1014, %v829
          %v1019 = vmin.f32 %v1015, %v830
          %v1020 = vmin.f32 %v1016, %v831
          %v1021 = vmin.f32 %v1017, %v832
          %v1022 = vmin.f32 %v1018, %v833
          %v1023 = vmin.f32 %v1019, %v834
          %v1024 = vmin.f32 %v1020, %v835
          %v1025 = vmin.f32 %v1021, %v836
          %v1026 = vmin.f32 %v1022, %v837
          %v1027 = vmin.f32 %v1023, %v1024
          %v1028 = vmin.f32 %v1025, %v1026
          %v1029 = vmin.f32 %v1027, %v1028
          %v1030 = vmin.f32 %v966, %v1029
          %1031 = vst [vmem:[#allocation2] sm:$0xff] %v1030
          %v1032 = vld [vmem:[#allocation3] sm:$0xff]
          %v1033 = vmax.f32 %v838, %v842
          %v1034 = vmax.f32 %v839, %v843
          %v1035 = vmax.f32 %v840, %v844
          %v1036 = vmax.f32 %v841, %v845
          %v1037 = vmax.f32 %v1033, %v846
          %v1038 = vmax.f32 %v1034, %v847
          %v1039 = vmax.f32 %v1035, %v848
          %v1040 = vmax.f32 %v1036, %v849
          %v1041 = vmax.f32 %v1037, %v850
          %v1042 = vmax.f32 %v1038, %v851
          %v1043 = vmax.f32 %v1039, %v852
          %v1044 = vmax.f32 %v1040, %v853
          %v1045 = vmax.f32 %v1041, %v854
          %v1046 = vmax.f32 %v1042, %v855
          %v1047 = vmax.f32 %v1043, %v856
          %v1048 = vmax.f32 %v1044, %v857
          %v1049 = vmax.f32 %v1045, %v858
          %v1050 = vmax.f32 %v1046, %v859
          %v1051 = vmax.f32 %v1047, %v860
          %v1052 = vmax.f32 %v1048, %v861
          %v1053 = vmax.f32 %v1049, %v862
          %v1054 = vmax.f32 %v1050, %v863
          %v1055 = vmax.f32 %v1051, %v864
          %v1056 = vmax.f32 %v1052, %v865
          %v1057 = vmax.f32 %v1053, %v866
          %v1058 = vmax.f32 %v1054, %v867
          %v1059 = vmax.f32 %v1055, %v868
          %v1060 = vmax.f32 %v1056, %v869
          %v1061 = vmax.f32 %v1057, %v870
          %v1062 = vmax.f32 %v1058, %v871
          %v1063 = vmax.f32 %v1059, %v872
          %v1064 = vmax.f32 %v1060, %v873
          %v1065 = vmax.f32 %v1061, %v874
          %v1066 = vmax.f32 %v1062, %v875
          %v1067 = vmax.f32 %v1063, %v876
          %v1068 = vmax.f32 %v1064, %v877
          %v1069 = vmax.f32 %v1065, %v878
          %v1070 = vmax.f32 %v1066, %v879
          %v1071 = vmax.f32 %v1067, %v880
          %v1072 = vmax.f32 %v1068, %v881
          %v1073 = vmax.f32 %v1069, %v882
          %v1074 = vmax.f32 %v1070, %v883
          %v1075 = vmax.f32 %v1071, %v884
          %v1076 = vmax.f32 %v1072, %v885
          %v1077 = vmax.f32 %v1073, %v886
          %v1078 = vmax.f32 %v1074, %v887
          %v1079 = vmax.f32 %v1075, %v888
          %v1080 = vmax.f32 %v1076, %v889
          %v1081 = vmax.f32 %v1077, %v890
          %v1082 = vmax.f32 %v1078, %v891
          %v1083 = vmax.f32 %v1079, %v892
          %v1084 = vmax.f32 %v1080, %v893
          %v1085 = vmax.f32 %v1081, %v894
          %v1086 = vmax.f32 %v1082, %v895
          %v1087 = vmax.f32 %v1083, %v896
          %v1088 = vmax.f32 %v1084, %v897
          %v1089 = vmax.f32 %v1085, %v898
          %v1090 = vmax.f32 %v1086, %v899
          %v1091 = vmax.f32 %v1087, %v900
          %v1092 = vmax.f32 %v1088, %v901
          %v1093 = vmax.f32 %v1089, %v1090
          %v1094 = vmax.f32 %v1091, %v1092
          %v1095 = vmax.f32 %v1093, %v1094
          %v1096 = vmax.f32 %v1032, %v1095
          %1097 = vst [vmem:[#allocation3] sm:$0xff] %v1096
          %v1098 = vld [vmem:[#allocation4] sm:$0xff]
          %v1099 = vadd.f32 %v902, %v903
          %v1100 = vadd.f32 %v1099, %v904
          %v1101 = vadd.f32 %v1100, %v905
          %v1102 = vadd.f32 %v1101, %v906
          %v1103 = vadd.f32 %v1102, %v907
          %v1104 = vadd.f32 %v1103, %v908
          %v1105 = vadd.f32 %v1104, %v909
          %v1106 = vadd.f32 %v1105, %v910
          %v1107 = vadd.f32 %v1106, %v911
          %v1108 = vadd.f32 %v1107, %v912
          %v1109 = vadd.f32 %v1108, %v913
          %v1110 = vadd.f32 %v1109, %v914
          %v1111 = vadd.f32 %v1110, %v915
          %v1112 = vadd.f32 %v1111, %v916
          %v1113 = vadd.f32 %v1112, %v917
          %v1114 = vadd.f32 %v1113, %v918
          %v1115 = vadd.f32 %v1114, %v919
          %v1116 = vadd.f32 %v1115, %v920
          %v1117 = vadd.f32 %v1116, %v921
          %v1118 = vadd.f32 %v1117, %v922
          %v1119 = vadd.f32 %v1118, %v923
          %v1120 = vadd.f32 %v1119, %v924
          %v1121 = vadd.f32 %v1120, %v925
          %v1122 = vadd.f32 %v1121, %v926
          %v1123 = vadd.f32 %v1122, %v927
          %v1124 = vadd.f32 %v1123, %v928
          %v1125 = vadd.f32 %v1124, %v929
          %v1126 = vadd.f32 %v1125, %v930
          %v1127 = vadd.f32 %v1126, %v931
          %v1128 = vadd.f32 %v1127, %v932
          %v1129 = vadd.f32 %v1128, %v933
          %v1130 = vadd.f32 %v1129, %v934
          %v1131 = vadd.f32 %v1130, %v935
          %v1132 = vadd.f32 %v1131, %v936
          %v1133 = vadd.f32 %v1132, %v937
          %v1134 = vadd.f32 %v1133, %v938
          %v1135 = vadd.f32 %v1134, %v939
          %v1136 = vadd.f32 %v1135, %v940
          %v1137 = vadd.f32 %v1136, %v941
          %v1138 = vadd.f32 %v1137, %v942
          %v1139 = vadd.f32 %v1138, %v943
          %v1140 = vadd.f32 %v1139, %v944
          %v1141 = vadd.f32 %v1140, %v945
          %v1142 = vadd.f32 %v1141, %v946
          %v1143 = vadd.f32 %v1142, %v947
          %v1144 = vadd.f32 %v1143, %v948
          %v1145 = vadd.f32 %v1144, %v949
          %v1146 = vadd.f32 %v1145, %v950
          %v1147 = vadd.f32 %v1146, %v951
          %v1148 = vadd.f32 %v1147, %v952
          %v1149 = vadd.f32 %v1148, %v953
          %v1150 = vadd.f32 %v1149, %v954
          %v1151 = vadd.f32 %v1150, %v955
          %v1152 = vadd.f32 %v1151, %v956
          %v1153 = vadd.f32 %v1152, %v957
          %v1154 = vadd.f32 %v1153, %v958
          %v1155 = vadd.f32 %v1154, %v959
          %v1156 = vadd.f32 %v1155, %v960
          %v1157 = vadd.f32 %v1156, %v961
          %v1158 = vadd.f32 %v1157, %v962
          %v1159 = vadd.f32 %v1158, %v963
          %v1160 = vadd.f32 %v1159, %v964
          %v1161 = vadd.f32 %v1160, %v965
          %v1162 = vadd.f32 %v1098, %v1161
          %1163 = vst [vmem:[#allocation4] sm:$0xff] %v1162
          %v1164 = vld [vmem:[#allocation5] sm:$0xff]
          %v1165 = vmul.f32 %v902, %v902
          %v1166 = vmul.f32 %v903, %v903
          %v1167 = vmul.f32 %v904, %v904
          %v1168 = vmul.f32 %v905, %v905
          %v1169 = vmul.f32 %v906, %v906
          %v1170 = vmul.f32 %v907, %v907
          %v1171 = vmul.f32 %v908, %v908
          %v1172 = vmul.f32 %v909, %v909
          %v1173 = vmul.f32 %v910, %v910
          %v1174 = vmul.f32 %v911, %v911
          %v1175 = vmul.f32 %v912, %v912
          %v1176 = vmul.f32 %v913, %v913
          %v1177 = vmul.f32 %v914, %v914
          %v1178 = vmul.f32 %v915, %v915
          %v1179 = vmul.f32 %v916, %v916
          %v1180 = vmul.f32 %v917, %v917
          %v1181 = vmul.f32 %v918, %v918
          %v1182 = vmul.f32 %v919, %v919
          %v1183 = vmul.f32 %v920, %v920
          %v1184 = vmul.f32 %v921, %v921
          %v1185 = vmul.f32 %v922, %v922
          %v1186 = vmul.f32 %v923, %v923
          %v1187 = vmul.f32 %v924, %v924
          %v1188 = vmul.f32 %v925, %v925
          %v1189 = vmul.f32 %v926, %v926
          %v1190 = vmul.f32 %v927, %v927
          %v1191 = vmul.f32 %v928, %v928
          %v1192 = vmul.f32 %v929, %v929
          %v1193 = vmul.f32 %v930, %v930
          %v1194 = vmul.f32 %v931, %v931
          %v1195 = vmul.f32 %v932, %v932
          %v1196 = vmul.f32 %v933, %v933
          %v1197 = vmul.f32 %v934, %v934
          %v1198 = vmul.f32 %v935, %v935
          %v1199 = vmul.f32 %v936, %v936
          %v1200 = vmul.f32 %v937, %v937
          %v1201 = vmul.f32 %v938, %v938
          %v1202 = vmul.f32 %v939, %v939
          %v1203 = vmul.f32 %v940, %v940
          %v1204 = vmul.f32 %v941, %v941
          %v1205 = vmul.f32 %v942, %v942
          %v1206 = vmul.f32 %v943, %v943
          %v1207 = vmul.f32 %v944, %v944
          %v1208 = vmul.f32 %v945, %v945
          %v1209 = vmul.f32 %v946, %v946
          %v1210 = vmul.f32 %v947, %v947
          %v1211 = vmul.f32 %v948, %v948
          %v1212 = vmul.f32 %v949, %v949
          %v1213 = vmul.f32 %v950, %v950
          %v1214 = vmul.f32 %v951, %v951
          %v1215 = vmul.f32 %v952, %v952
          %v1216 = vmul.f32 %v953, %v953
          %v1217 = vmul.f32 %v954, %v954
          %v1218 = vmul.f32 %v955, %v955
          %v1219 = vmul.f32 %v956, %v956
          %v1220 = vmul.f32 %v957, %v957
          %v1221 = vmul.f32 %v958, %v958
          %v1222 = vmul.f32 %v959, %v959
          %v1223 = vmul.f32 %v960, %v960
          %v1224 = vmul.f32 %v961, %v961
          %v1225 = vmul.f32 %v962, %v962
          %v1226 = vmul.f32 %v963, %v963
          %v1227 = vmul.f32 %v964, %v964
          %v1228 = vmul.f32 %v965, %v965
          %v1229 = vadd.f32 %v1165, %v1166
          %v1230 = vadd.f32 %v1229, %v1167
          %v1231 = vadd.f32 %v1230, %v1168
          %v1232 = vadd.f32 %v1231, %v1169
          %v1233 = vadd.f32 %v1232, %v1170
          %v1234 = vadd.f32 %v1233, %v1171
          %v1235 = vadd.f32 %v1234, %v1172
          %v1236 = vadd.f32 %v1235, %v1173
          %v1237 = vadd.f32 %v1236, %v1174
          %v1238 = vadd.f32 %v1237, %v1175
          %v1239 = vadd.f32 %v1238, %v1176
          %v1240 = vadd.f32 %v1239, %v1177
          %v1241 = vadd.f32 %v1240, %v1178
          %v1242 = vadd.f32 %v1241, %v1179
          %v1243 = vadd.f32 %v1242, %v1180
          %v1244 = vadd.f32 %v1243, %v1181
          %v1245 = vadd.f32 %v1244, %v1182
          %v1246 = vadd.f32 %v1245, %v1183
          %v1247 = vadd.f32 %v1246, %v1184
          %v1248 = vadd.f32 %v1247, %v1185
          %v1249 = vadd.f32 %v1248, %v1186
          %v1250 = vadd.f32 %v1249, %v1187
          %v1251 = vadd.f32 %v1250, %v1188
          %v1252 = vadd.f32 %v1251, %v1189
          %v1253 = vadd.f32 %v1252, %v1190
          %v1254 = vadd.f32 %v1253, %v1191
          %v1255 = vadd.f32 %v1254, %v1192
          %v1256 = vadd.f32 %v1255, %v1193
          %v1257 = vadd.f32 %v1256, %v1194
          %v1258 = vadd.f32 %v1257, %v1195
          %v1259 = vadd.f32 %v1258, %v1196
          %v1260 = vadd.f32 %v1259, %v1197
          %v1261 = vadd.f32 %v1260, %v1198
          %v1262 = vadd.f32 %v1261, %v1199
          %v1263 = vadd.f32 %v1262, %v1200
          %v1264 = vadd.f32 %v1263, %v1201
          %v1265 = vadd.f32 %v1264, %v1202
          %v1266 = vadd.f32 %v1265, %v1203
          %v1267 = vadd.f32 %v1266, %v1204
          %v1268 = vadd.f32 %v1267, %v1205
          %v1269 = vadd.f32 %v1268, %v1206
          %v1270 = vadd.f32 %v1269, %v1207
          %v1271 = vadd.f32 %v1270, %v1208
          %v1272 = vadd.f32 %v1271, %v1209
          %v1273 = vadd.f32 %v1272, %v1210
          %v1274 = vadd.f32 %v1273, %v1211
          %v1275 = vadd.f32 %v1274, %v1212
          %v1276 = vadd.f32 %v1275, %v1213
          %v1277 = vadd.f32 %v1276, %v1214
          %v1278 = vadd.f32 %v1277, %v1215
          %v1279 = vadd.f32 %v1278, %v1216
          %v1280 = vadd.f32 %v1279, %v1217
          %v1281 = vadd.f32 %v1280, %v1218
          %v1282 = vadd.f32 %v1281, %v1219
          %v1283 = vadd.f32 %v1282, %v1220
          %v1284 = vadd.f32 %v1283, %v1221
          %v1285 = vadd.f32 %v1284, %v1222
          %v1286 = vadd.f32 %v1285, %v1223
          %v1287 = vadd.f32 %v1286, %v1224
          %v1288 = vadd.f32 %v1287, %v1225
          %v1289 = vadd.f32 %v1288, %v1226
          %v1290 = vadd.f32 %v1289, %v1227
          %v1291 = vadd.f32 %v1290, %v1228
          %v1292 = vadd.f32 %v1164, %v1291
          %1293 = vst [vmem:[#allocation5] sm:$0xff] %v1292
        $region40: #{_observe.1} parent=31 // pred_fallthru
          _
      $region32: #{_observe.1} parent=23 // pred_fallthru
        _
      // Predicated region
      $region41: #{_observe.1} parent=23 // pred_check
        %p1294 = pneg %p162
      $region42: #{_observe.1} parent=23 // pred_check_branch
        %1296 = sbr.rel (%p1294) target = $region44
      $region43: #{_observe.1} parent=23 // pred_region
        %v1297 = vld [vmem:[#allocation2] sm:$0xff]
        %1298 = vst [vmem:[%s161] sm:$0xff] %v1297
        %v1299 = vld [vmem:[#allocation3] sm:$0xff]
        %s1300 = scalar_lea.vmem %s161, 8
        %1301 = vst [vmem:[%s1300] sm:$0xff] %v1299
        %v1302 = vld [vmem:[#allocation4] sm:$0xff]
        %s1303 = scalar_lea.vmem %s161, 16
        %1304 = vst [vmem:[%s1303] sm:$0xff] %v1302
        %v1305 = vld [vmem:[#allocation5] sm:$0xff]
        %s1306 = scalar_lea.vmem %s161, 24
        %1307 = vst [vmem:[%s1306] sm:$0xff] %v1305
      $region44: #{_observe.1} parent=23 // pred_fallthru
        _
      %p1308 = scmp.lt.s32.totalorder %s16, 1
      %s1309 = scalar_select %p1308, %s16, 1
      %s1310 = smul.addr %s1309, 4
      %s1311 = smul.addr %s1310, 8
      %s1312 = scalar_lea.vmem %s1, %s1311
      // Predicated region
      $region45: #{_observe.1} parent=23 // pred_check
        %p1313 = pneg %p74
      $region46: #{_observe.1} parent=23 // pred_check_branch
        %1315 = sbr.rel (%p1313) target = $region48
      $region47: #{_observe.1} parent=23 // pred_region
        _
      $region48: #{_observe.1} parent=23 // pred_fallthru
        _
    $region24: #{_observe.1} parent=5 // pred_fallthru
      _
    %p1316 = scmp.le.s32.totalorder 2, %s7
    // Predicated region
    $region49: #{_observe.1} parent=5 // pred_check
      %p1317 = pneg %p1316
    $region50: #{_observe.1} parent=5 // pred_check_branch
      %1319 = sbr.rel (%p1317) target = $region52
    $region51: #{_observe.1} parent=5 // pred_region
      %s1320 = ssub.s32 %s7, 2
      // Predicated region
      $region53: #{_observe.1} parent=51 // pred_check
        %p1321 = pneg %p80
      $region54: #{_observe.1} parent=51 // pred_check_branch
        %1323 = sbr.rel (%p1321) target = $region56
      $region55: #{_observe.1} parent=51 // pred_region
        %p1324 = scmp.lt.s32.totalorder %s18, 1
        %s1325 = scalar_select %p1324, %s18, 1
        %s1326 = smul.addr %s1325, 4
        %s1327 = smul.addr %s1326, 8
        %s1328 = scalar_lea.vmem %s1, %s1327
      $region56: #{_observe.1} parent=51 // pred_fallthru
        _
    $region52: #{_observe.1} parent=5 // pred_fallthru
      _
  $region6: #{_observe.1} parent=0 // loop_footer
    %s11 = sadd.s32 1, %s7
  $region7: #{_observe.1} parent=0 // loop_footer_branch
    %6 = sbr.rel target = $region3
  $region8: #{_observe.1} parent=0 // loop_exit
    _

</llo_original>
